<compile_context>
chip_gen: v6e
topology: v6e:2x2x1
jax: 0.10.0
libtpu: 0.0.40
codegen_flags: <defaults>
</compile_context>

<pallas_src>
import jax
import jax.numpy as jnp
from jax.experimental import pallas as pl
from jax.experimental.pallas import tpu as pltpu

EPS = 1e-3  # BatchNorm2d eps

# Packed-params column layout inside the (16, 35) ref.
_W3_LO, _W3_HI = 0, 8        # conv2d3 weight (16, 8)
_W4_LO, _W4_HI = 8, 24       # conv2d4 weight (16, 16)
_B3_COL = 24                 # conv2d3 bias
_GAMMA_COL = 25              # BN weight
_BETA_COL = 26               # BN bias
_X8_LO, _X8_HI = 27, 35      # excitation vector, broadcast over 16 sublanes
_PACK_COLS = 35


def fused_kernel(packed_ref, x6_ref, o_ref):
    # packed_ref : (16, 35)  [w3 | w4 | b3 | gamma | beta | x8 (row-bcast)]
    # x6_ref     : (16, HW)  main feature map, channels on sublanes
    # o_ref      : (16, HW)
    hw = x6_ref.shape[1]
    inv_hw = 1.0 / hw

    w3 = packed_ref[:, _W3_LO:_W3_HI]                 # (16, 8)
    w4 = packed_ref[:, _W4_LO:_W4_HI]                 # (16, 16)
    b3 = packed_ref[:, _B3_COL:_B3_COL + 1]           # (16, 1)
    gamma = packed_ref[:, _GAMMA_COL:_GAMMA_COL + 1]  # (16, 1)
    beta = packed_ref[:, _BETA_COL:_BETA_COL + 1]     # (16, 1)
    x8b = packed_ref[:, _X8_LO:_X8_HI]                # (16, 8)

    # ReLU on the (sublane-broadcast) excitation vector.
    x9 = jnp.maximum(x8b, 0.0)                                        # (16, 8)

    # conv2d3: 1x1 conv on a 1x1 spatial map == per-out-channel dot product.
    x10 = jnp.sum(w3 * x9, axis=1, keepdims=True) + b3                # (16, 1)

    # Hardsigmoid: clip(x/6 + 1/2, 0, 1)
    x11 = jnp.clip(x10 * (1.0 / 6.0) + 0.5, 0.0, 1.0)                 # (16, 1)

    # Fold the per-input-channel gate into the conv2d4 weight columns, so the
    # full-map (16, HW) elementwise multiply (x12) never materializes.
    gate_row = x11.reshape(1, 16)                                     # (1, 16)
    w_scaled = w4 * gate_row                                          # (16, 16)

    x6 = x6_ref[...]                                                  # (16, HW)

    # conv2d4 (1x1, no bias) as a channel-mixing matmul on the MXU.
    x13 = jnp.dot(w_scaled, x6, preferred_element_type=jnp.float32)   # (16, HW)

    # BatchNorm2d (training mode) batch stats.
    # Mean via identity: rowsum(W @ X) = W @ colsum(X)  (no x13 reduce pass).
    x6_colsum = jnp.sum(x6, axis=1, keepdims=True)                    # (16, 1)
    mean = jnp.sum(w_scaled * x6_colsum.reshape(1, 16),
                   axis=1, keepdims=True) * inv_hw                    # (16, 1)

    # Centered (biased) variance over the VMEM-resident x13.
    d = x13 - mean                                                    # (16, HW)
    var = jnp.sum(d * d, axis=1, keepdims=True) * inv_hw              # (16, 1)

    # BN affine folded into a single per-channel scale/shift on the write-out.
    scale = jax.lax.rsqrt(var + EPS) * gamma                          # (16, 1)
    o_ref[...] = d * scale + beta


def fused_forward(x8, x6, w3, b3, w4, gamma, beta):
    """x8: (1,8,1,1) f32, x6: (1,16,56,56) f32 (NCHW). Returns (1,16,56,56)."""
    n, c_in, _, _ = x8.shape
    _, c_out, h, w = x6.shape
    hw = h * w

    x6_v = x6.reshape(c_out, hw).astype(jnp.float32)
    # Pack every tiny operand into one (16, 35) tile -> 2 input DMAs total.
    packed = jnp.concatenate(
        [
            w3.reshape(c_out, c_in),                                  # cols 0:8
            w4.reshape(c_out, c_out),                                 # cols 8:24
            b3.reshape(c_out, 1),                                     # col 24
            gamma.reshape(c_out, 1),                                  # col 25
            beta.reshape(c_out, 1),                                   # col 26
            jnp.broadcast_to(x8.reshape(1, c_in), (c_out, c_in)),     # cols 27:35
        ],
        axis=1,
    ).astype(jnp.float32)
    assert packed.shape == (c_out, _PACK_COLS)

    def full_spec(shape):
        return pl.BlockSpec(shape, lambda i: (0,) * len(shape))

    out = pl.pallas_call(
        fused_kernel,
        out_shape=jax.ShapeDtypeStruct((c_out, hw), jnp.float32),
        grid=(1,),
        in_specs=[full_spec(packed.shape), full_spec(x6_v.shape)],
        out_specs=full_spec((c_out, hw)),
        compiler_params=pltpu.CompilerParams(
            dimension_semantics=("arbitrary",)
        ),
    )(packed, x6_v)
    return out.reshape(1, c_out, h, w)


def ref_forward(x8, x6, w3, b3, w4, gamma, beta):
    """Pure-JAX reference of the PyTorch forward (NCHW, training-mode BN)."""
    c_out, c_in = w3.shape[0], w3.shape[1]
    x9 = jnp.maximum(x8, 0.0)
    x10 = jnp.einsum("nchw,oc->nohw", x9, w3.reshape(c_out, c_in)) + b3.reshape(1, c_out, 1, 1)
    x11 = jnp.clip(x10 / 6.0 + 0.5, 0.0, 1.0)
    x12 = x11 * x6
    x13 = jnp.einsum("nchw,oc->nohw", x12, w4.reshape(c_out, c_out))
    mean = jnp.mean(x13, axis=(0, 2, 3), keepdims=True)
    var = jnp.mean(jnp.square(x13 - mean), axis=(0, 2, 3), keepdims=True)
    return (x13 - mean) * jax.lax.rsqrt(var + EPS) * gamma.reshape(1, c_out, 1, 1) \
        + beta.reshape(1, c_out, 1, 1)


if __name__ == "__main__":
    key = jax.random.PRNGKey(0)
    k_x8, k_x6, k_w3, k_b3, k_w4 = jax.random.split(key, 5)

    # Shapes implied by the module's forward
    x8 = jax.random.normal(k_x8, (1, 8, 1, 1), dtype=jnp.float32)
    x6 = jax.random.normal(k_x6, (1, 16, 56, 56), dtype=jnp.float32)

    # Deterministic parameter init (shapes from __init__)
    w3 = jax.random.normal(k_w3, (16, 8, 1, 1), dtype=jnp.float32) * 0.2   # conv2d3 weight
    b3 = jax.random.normal(k_b3, (16,), dtype=jnp.float32) * 0.1           # conv2d3 bias
    w4 = jax.random.normal(k_w4, (16, 16, 1, 1), dtype=jnp.float32) * 0.2  # conv2d4 weight (no bias)
    gamma = jnp.ones((16,), dtype=jnp.float32)                             # BN weight init
    beta = jnp.zeros((16,), dtype=jnp.float32)                             # BN bias init

    out = fused_forward(x8, x6, w3, b3, w4, gamma, beta)
    out = jax.block_until_ready(out)

    ref = ref_forward(x8, x6, w3, b3, w4, gamma, beta)
    assert out.shape == (1, 16, 56, 56)
    assert jnp.allclose(out, ref, rtol=1e-3, atol=1e-3), float(jnp.max(jnp.abs(out - ref)))

    print("KERNEL_OK")
</pallas_src>

<mosaic_0001>
module attributes {stable_mosaic.version = 11 : i64} {
  func.func @fused_kernel(%arg0: i32, %arg1: memref<16x35xf32, #tpu.memory_space<vmem>>, %arg2: memref<16x3136xf32, #tpu.memory_space<vmem>>, %arg3: memref<16x3136xf32, #tpu.memory_space<vmem>>) attributes {dimension_semantics = [#tpu.dimension_semantics<arbitrary>], iteration_bounds = array<i64: 1>, scalar_prefetch = 0 : i64, scratch_operands = 0 : i64, tpu.core_type = #tpu.core_type<tc>, window_params = [{pipeline_mode = #tpu.pipeline_mode<synchronous>, transform_indices = @transform_0, window_bounds = array<i64: 16, 35>}, {pipeline_mode = #tpu.pipeline_mode<synchronous>, transform_indices = @transform_1, window_bounds = array<i64: 16, 3136>}, {pipeline_mode = #tpu.pipeline_mode<synchronous>, transform_indices = @transform_2, window_bounds = array<i64: 16, 3136>}]} {
    %c0 = arith.constant 0 : index
    %c0_0 = arith.constant 0 : index
    %0 = vector.load %arg1[%c0, %c0_0] : memref<16x35xf32, #tpu.memory_space<vmem>>, vector<16x8xf32>
    %c0_1 = arith.constant 0 : index
    %c8 = arith.constant 8 : index
    %1 = vector.load %arg1[%c0_1, %c8] : memref<16x35xf32, #tpu.memory_space<vmem>>, vector<16x16xf32>
    %c0_2 = arith.constant 0 : index
    %c24 = arith.constant 24 : index
    %2 = vector.load %arg1[%c0_2, %c24] : memref<16x35xf32, #tpu.memory_space<vmem>>, vector<16x1xf32>
    %c0_3 = arith.constant 0 : index
    %c25 = arith.constant 25 : index
    %3 = vector.load %arg1[%c0_3, %c25] : memref<16x35xf32, #tpu.memory_space<vmem>>, vector<16x1xf32>
    %c0_4 = arith.constant 0 : index
    %c26 = arith.constant 26 : index
    %4 = vector.load %arg1[%c0_4, %c26] : memref<16x35xf32, #tpu.memory_space<vmem>>, vector<16x1xf32>
    %c0_5 = arith.constant 0 : index
    %c27 = arith.constant 27 : index
    %5 = vector.load %arg1[%c0_5, %c27] : memref<16x35xf32, #tpu.memory_space<vmem>>, vector<16x8xf32>
    %cst = arith.constant 0.000000e+00 : f32
    %6 = vector.broadcast %cst : f32 to vector<16x8xf32>
    %7 = arith.maximumf %5, %6 : vector<16x8xf32>
    %8 = arith.mulf %0, %7 : vector<16x8xf32>
    %cst_6 = arith.constant dense<0.000000e+00> : vector<16xf32>
    %9 = vector.multi_reduction <add>, %8, %cst_6 [1] : vector<16x8xf32> to vector<16xf32>
    %10 = vector.shape_cast %9 : vector<16xf32> to vector<16x1xf32>
    %11 = arith.addf %10, %2 : vector<16x1xf32>
    %cst_7 = arith.constant 0.166666672 : f32
    %12 = vector.broadcast %cst_7 : f32 to vector<16x1xf32>
    %13 = arith.mulf %11, %12 : vector<16x1xf32>
    %cst_8 = arith.constant 5.000000e-01 : f32
    %14 = vector.broadcast %cst_8 : f32 to vector<16x1xf32>
    %15 = arith.addf %13, %14 : vector<16x1xf32>
    %cst_9 = arith.constant 0.000000e+00 : f32
    %cst_10 = arith.constant 1.000000e+00 : f32
    %16 = vector.broadcast %cst_9 : f32 to vector<16x1xf32>
    %17 = arith.maximumf %16, %15 : vector<16x1xf32>
    %18 = vector.broadcast %cst_10 : f32 to vector<16x1xf32>
    %19 = arith.minimumf %18, %17 : vector<16x1xf32>
    %20 = vector.shape_cast %19 : vector<16x1xf32> to vector<1x16xf32>
    %21 = vector.broadcast %20 : vector<1x16xf32> to vector<16x16xf32>
    %22 = arith.mulf %1, %21 : vector<16x16xf32>
    %c0_11 = arith.constant 0 : index
    %c0_12 = arith.constant 0 : index
    %23 = vector.load %arg2[%c0_11, %c0_12] : memref<16x3136xf32, #tpu.memory_space<vmem>>, vector<16x3136xf32>
    %cst_13 = arith.constant dense<0.000000e+00> : vector<16x3136xf32>
    %24 = tpu.matmul %22, %23, %cst_13 {dimension_numbers = #tpu.dot_dimension_numbers<[1], [0], [0], [1], [0, 0, 1, 1], [], []>} : vector<16x16xf32>, vector<16x3136xf32>, vector<16x3136xf32> -> vector<16x3136xf32>
    %cst_14 = arith.constant dense<0.000000e+00> : vector<16xf32>
    %25 = vector.multi_reduction <add>, %23, %cst_14 [1] : vector<16x3136xf32> to vector<16xf32>
    %26 = vector.shape_cast %25 : vector<16xf32> to vector<16x1xf32>
    %27 = vector.shape_cast %26 : vector<16x1xf32> to vector<1x16xf32>
    %28 = vector.broadcast %27 : vector<1x16xf32> to vector<16x16xf32>
    %29 = arith.mulf %22, %28 : vector<16x16xf32>
    %cst_15 = arith.constant dense<0.000000e+00> : vector<16xf32>
    %30 = vector.multi_reduction <add>, %29, %cst_15 [1] : vector<16x16xf32> to vector<16xf32>
    %31 = vector.shape_cast %30 : vector<16xf32> to vector<16x1xf32>
    %cst_16 = arith.constant 3.18877544E-4 : f32
    %32 = vector.broadcast %cst_16 : f32 to vector<16x1xf32>
    %33 = arith.mulf %31, %32 : vector<16x1xf32>
    %34 = vector.broadcast %33 : vector<16x1xf32> to vector<16x3136xf32>
    %35 = arith.subf %24, %34 : vector<16x3136xf32>
    %36 = arith.mulf %35, %35 : vector<16x3136xf32>
    %cst_17 = arith.constant dense<0.000000e+00> : vector<16xf32>
    %37 = vector.multi_reduction <add>, %36, %cst_17 [1] : vector<16x3136xf32> to vector<16xf32>
    %38 = vector.shape_cast %37 : vector<16xf32> to vector<16x1xf32>
    %cst_18 = arith.constant 3.18877544E-4 : f32
    %39 = vector.broadcast %cst_18 : f32 to vector<16x1xf32>
    %40 = arith.mulf %38, %39 : vector<16x1xf32>
    %cst_19 = arith.constant 1.000000e-03 : f32
    %41 = vector.broadcast %cst_19 : f32 to vector<16x1xf32>
    %42 = arith.addf %40, %41 : vector<16x1xf32>
    %43 = math.rsqrt %42 : vector<16x1xf32>
    %44 = arith.mulf %43, %3 : vector<16x1xf32>
    %45 = vector.broadcast %44 : vector<16x1xf32> to vector<16x3136xf32>
    %46 = arith.mulf %35, %45 : vector<16x3136xf32>
    %47 = vector.broadcast %4 : vector<16x1xf32> to vector<16x3136xf32>
    %48 = arith.addf %46, %47 : vector<16x3136xf32>
    %c0_20 = arith.constant 0 : index
    %c0_21 = arith.constant 0 : index
    %49 = vector.load %arg3[%c0_20, %c0_21] : memref<16x3136xf32, #tpu.memory_space<vmem>>, vector<16x3136xf32>
    tpu.vector_store %arg3[%c0_20, %c0_21], %48 {strides = array<i32>} : memref<16x3136xf32, #tpu.memory_space<vmem>>, vector<16x3136xf32>,
    return
  }
  func.func @transform_0(%arg0: i32) -> (i32, i32) {
    %c0_i32 = arith.constant 0 : i32
    %c0_i32_0 = arith.constant 0 : i32
    %c0_i32_1 = arith.constant 0 : i32
    return %c0_i32, %c0_i32_0 : i32, i32
  }
  func.func @transform_1(%arg0: i32) -> (i32, i32) {
    %c0_i32 = arith.constant 0 : i32
    %c0_i32_0 = arith.constant 0 : i32
    %c0_i32_1 = arith.constant 0 : i32
    return %c0_i32, %c0_i32_0 : i32, i32
  }
  func.func @transform_2(%arg0: i32) -> (i32, i32) {
    %c0_i32 = arith.constant 0 : i32
    %c0_i32_0 = arith.constant 0 : i32
    %c0_i32_1 = arith.constant 0 : i32
    return %c0_i32, %c0_i32_0 : i32, i32
  }
}

</mosaic_0001>

<llo_original>
// kernel: tpu_custom_call.1
$region0: #{tpu_custom_call.1}
  #allocation0 [shape = 'u32[]', space=smem, size = 0x4, offset = 0x4, fixed_abs, tag = 'smem constant byte address 0x4 - core index']
  #allocation1 [shape = 'u32[144,128]{1,0:T(1,128)}', space=vmem, size = 0x12000, scoped, tag = 'internal scratch']
  %s0 = inlined_call_operand.hbm [shape: f32[16,35], index: 0, kind: input, shape index: {}]
  %s1 = inlined_call_operand.hbm [shape: f32[16,3136], index: 1, kind: input, shape index: {}]
  %s2 = inlined_call_operand.hbm [shape: f32[16,3136], index: 2, kind: output, shape index: {}]
  %s3 = sld [smem:[#allocation0]]
  $region26: #{tpu_custom_call.1} parent=0
    _
  %s5 = ssub.s32 1, %s3
  %s6 = scalar_select 0, %s5, %s3
  $region1: #{tpu_custom_call.1} parent=0
    #allocation2 [shape = 'u8[8192]{0}', space=vmem, size = 0x2000, scoped, tag = 'input window, operand 0, single buffered']
    #allocation3 [shape = 's32[1]{0}', space=sflag, size = 0x4, scoped, tag = 'scoped memory for tpu_custom_call.1']
    #allocation4 [shape = 's32[1]{0}', space=sflag, size = 0x4, scoped, tag = 'scoped memory for tpu_custom_call.1']
    #allocation5 [shape = 'u8[204800]{0}', space=vmem, size = 0x32000, scoped, tag = 'input window, operand 1, single buffered']
    #allocation6 [shape = 's32[1]{0}', space=sflag, size = 0x4, scoped, tag = 'scoped memory for tpu_custom_call.1']
    #allocation7 [shape = 'u8[204800]{0}', space=vmem, size = 0x32000, scoped, tag = 'output window, operand 0, single buffered']
    %7 = vsyncpa [#allocation3], 0
    %8 = vsyncpa [#allocation6], 0
    %9 = vsyncpa [#allocation4], 0
    // Predicated region
    $region2: #{tpu_custom_call.1} parent=1 // pred_check
      _
    $region3: #{tpu_custom_call.1} parent=1 // pred_check_branch
      %11 = sbr.rel (0) target = $region5
    $region4: #{tpu_custom_call.1} parent=1 // pred_region
      %s13 = ssub.s32 256, 256
      %14 = vsyncadd [#allocation3], %s13
      %s15 = sshll.u32 [#allocation2], 4
      %s16 = int_to_ptr.vmem [resolvable:$true] %s15
      %21 = dma.hbm_to_vmem [thread:$0]  %s0, 256, %s16, [#allocation3], 128, 128, 8
    $region5: #{tpu_custom_call.1} parent=1 // pred_fallthru
      _
    // Predicated region
    $region6: #{tpu_custom_call.1} parent=1 // pred_check
      _
    $region7: #{tpu_custom_call.1} parent=1 // pred_check_branch
      %23 = sbr.rel (0) target = $region9
    $region8: #{tpu_custom_call.1} parent=1 // pred_region
      %s25 = ssub.s32 6400, 6400
      %26 = vsyncadd [#allocation6], %s25
      %s27 = sshll.u32 [#allocation5], 4
      %s28 = int_to_ptr.vmem [resolvable:$true] %s27
      %33 = dma.hbm_to_vmem [thread:$0]  %s1, 6400, %s28, [#allocation6], 3200, 3200, 200
    $region9: #{tpu_custom_call.1} parent=1 // pred_fallthru
      _
    // Predicated region
    $region10: #{tpu_custom_call.1} parent=1 // pred_check
      _
    $region11: #{tpu_custom_call.1} parent=1 // pred_check_branch
      %35 = sbr.rel (0) target = $region13
    $region12: #{tpu_custom_call.1} parent=1 // pred_region
      %36 = dma.done [#allocation3], 256
    $region13: #{tpu_custom_call.1} parent=1 // pred_fallthru
      _
    // Predicated region
    $region14: #{tpu_custom_call.1} parent=1 // pred_check
      _
    $region15: #{tpu_custom_call.1} parent=1 // pred_check_branch
      %38 = sbr.rel (0) target = $region17
    $region16: #{tpu_custom_call.1} parent=1 // pred_region
      %39 = dma.done [#allocation6], 6400
    $region17: #{tpu_custom_call.1} parent=1 // pred_fallthru
      _
    %v40 = vld [vmem:[#allocation2] sm:$0xff]
    %v41 = vld [vmem:[#allocation2 + $0x8] sm:$0xff]
    %v42 = vmax.f32 %v40, 0.0
    %v43 = vmax.f32 %v41, 0.0
    %46 = vrot.lane.b32.xlu0 %v42, 101
    %v47 = vpop.permute.xlu0 %46
    %48 = vrot.lane.b32.xlu0 %v43, 101
    %v49 = vpop.permute.xlu0 %48
    %v52 = vmul.f32 %v40, %v47
    %v53 = vmul.f32 %v41, %v49
    %vm54 = vcmask 64512
    %v55 = vsel %vm54, %v52, 0.0
    %56 = vadd.xlane.f32.xlu0 %v55
    %v57 = vpop.xlane.xlu0 %56
    %v58 = vsel %vm54, %v53, 0.0
    %59 = vadd.xlane.f32.xlu0 %v58
    %v60 = vpop.xlane.xlu0 %59
    %v61 = vadd.f32 %v57, %v40
    %v62 = vadd.f32 %v60, %v41
    %v63 = vmul.f32 %v61, 0.16666667
    %v64 = vmul.f32 %v62, 0.16666667
    %v65 = vadd.f32 %v63, 0.5
    %v66 = vadd.f32 %v64, 0.5
    %v67 = vmax.f32 %v65, 0.0
    %v68 = vmax.f32 %v66, 0.0
    %v69 = vmin.f32 %v67, 1.0
    %v70 = vmin.f32 %v68, 1.0
    %73 = vset.pattern.permute.xlu0 24
    %74 = vperm.xlu0 %73, %v69
    %v75 = vpop.permute.xlu0 %74
    %76 = vset.pattern.permute.xlu0 24
    %77 = vperm.xlu0 %76, %v70
    %v78 = vpop.permute.xlu0 %77
    %v79 = vlaneseq
    %v80 = vand.u32 %v79, 127
    %v81 = vadd.s32 %v80, 4294967288
    %v82 = vlaneseq
    %v83 = vshrl.u32 %v82, 7
    %v84 = vsub.s32 %v81, %v83
    %v85 = vrot.slane %v75, %v84
    %v86 = vadd.s32 %v80, 4294967280
    %v87 = vlaneseq
    %v88 = vshrl.u32 %v87, 7
    %v89 = vsub.s32 %v86, %v88
    %v90 = vrot.slane %v78, %v89
    %vm91 = vcmask 195712
    %v92 = vsel %vm91, %v90, %v85
    %vm93 = vcmask 1042434
    %v94 = vsel %vm93, %v92, %v92
    %vm95 = vcmask 1043459
    %v96 = vsel %vm95, %v92, %v94
    %vm97 = vcmask 1044484
    %v98 = vsel %vm97, %v92, %v96
    %vm99 = vcmask 1045509
    %v100 = vsel %vm99, %v92, %v98
    %vm101 = vcmask 1046534
    %v102 = vsel %vm101, %v92, %v100
    %vm103 = vcmask 1047559
    %v104 = vsel %vm103, %v92, %v102
    %v106 = vmul.f32 %v40, %v104
    %v107 = vmul.f32 %v41, %v104
    %v108 = vld [vmem:[#allocation5] sm:$0xff]
    %v109 = vld [vmem:[#allocation5 + $0x8] sm:$0xff]
    %v110 = vld [vmem:[#allocation5 + $0x10] sm:$0xff]
    %v111 = vld [vmem:[#allocation5 + $0x18] sm:$0xff]
    %v112 = vld [vmem:[#allocation5 + $0x20] sm:$0xff]
    %v113 = vld [vmem:[#allocation5 + $0x28] sm:$0xff]
    %v114 = vld [vmem:[#allocation5 + $0x30] sm:$0xff]
    %v115 = vld [vmem:[#allocation5 + $0x38] sm:$0xff]
    %v116 = vld [vmem:[#allocation5 + $0x40] sm:$0xff]
    %v117 = vld [vmem:[#allocation5 + $0x48] sm:$0xff]
    %v118 = vld [vmem:[#allocation5 + $0x50] sm:$0xff]
    %v119 = vld [vmem:[#allocation5 + $0x58] sm:$0xff]
    %v120 = vld [vmem:[#allocation5 + $0x60] sm:$0xff]
    %v121 = vld [vmem:[#allocation5 + $0x68] sm:$0xff]
    %v122 = vld [vmem:[#allocation5 + $0x70] sm:$0xff]
    %v123 = vld [vmem:[#allocation5 + $0x78] sm:$0xff]
    %v124 = vld [vmem:[#allocation5 + $0x80] sm:$0xff]
    %v125 = vld [vmem:[#allocation5 + $0x88] sm:$0xff]
    %v126 = vld [vmem:[#allocation5 + $0x90] sm:$0xff]
    %v127 = vld [vmem:[#allocation5 + $0x98] sm:$0xff]
    %v128 = vld [vmem:[#allocation5 + $0xa0] sm:$0xff]
    %v129 = vld [vmem:[#allocation5 + $0xa8] sm:$0xff]
    %v130 = vld [vmem:[#allocation5 + $0xb0] sm:$0xff]
    %v131 = vld [vmem:[#allocation5 + $0xb8] sm:$0xff]
    %v132 = vld [vmem:[#allocation5 + $0xc0] sm:$0xff]
    %v133 = vld [vmem:[#allocation5 + $0xc8] sm:$0xff]
    %v134 = vld [vmem:[#allocation5 + $0xd0] sm:$0xff]
    %v135 = vld [vmem:[#allocation5 + $0xd8] sm:$0xff]
    %v136 = vld [vmem:[#allocation5 + $0xe0] sm:$0xff]
    %v137 = vld [vmem:[#allocation5 + $0xe8] sm:$0xff]
    %v138 = vld [vmem:[#allocation5 + $0xf0] sm:$0xff]
    %v139 = vld [vmem:[#allocation5 + $0xf8] sm:$0xff]
    %v140 = vld [vmem:[#allocation5 + $0x100] sm:$0xff]
    %v141 = vld [vmem:[#allocation5 + $0x108] sm:$0xff]
    %v142 = vld [vmem:[#allocation5 + $0x110] sm:$0xff]
    %v143 = vld [vmem:[#allocation5 + $0x118] sm:$0xff]
    %v144 = vld [vmem:[#allocation5 + $0x120] sm:$0xff]
    %v145 = vld [vmem:[#allocation5 + $0x128] sm:$0xff]
    %v146 = vld [vmem:[#allocation5 + $0x130] sm:$0xff]
    %v147 = vld [vmem:[#allocation5 + $0x138] sm:$0xff]
    %v148 = vld [vmem:[#allocation5 + $0x140] sm:$0xff]
    %v149 = vld [vmem:[#allocation5 + $0x148] sm:$0xff]
    %v150 = vld [vmem:[#allocation5 + $0x150] sm:$0xff]
    %v151 = vld [vmem:[#allocation5 + $0x158] sm:$0xff]
    %v152 = vld [vmem:[#allocation5 + $0x160] sm:$0xff]
    %v153 = vld [vmem:[#allocation5 + $0x168] sm:$0xff]
    %v154 = vld [vmem:[#allocation5 + $0x170] sm:$0xff]
    %v155 = vld [vmem:[#allocation5 + $0x178] sm:$0xff]
    %v156 = vld [vmem:[#allocation5 + $0x180] sm:$0xff]
    %v157 = vld [vmem:[#allocation5 + $0x188] sm:$0xff]
    %160 = vrot.lane.b32.xlu0 %v106, 120
    %v161 = vpop.permute.xlu0 %160
    %162 = vrot.lane.b32.xlu0 %v107, 120
    %v163 = vpop.permute.xlu0 %162
    %vm164 = vcmask 130048
    %v165 = vsel %vm164, %v161, 0
    %v167 = vsel %vm164, %v163, 0
    %169 = vmatprep.subr.mxu0 0.0
    %170 = vmatpush1.msra.mxu0 0.0
    %171 = vmatprep.subr.mxu0 0.0
    %172 = vmatpush1.msra.mxu0 0.0
    %173 = vmatprep.subr.mxu0 0.0
    %174 = vmatpush1.msra.mxu0 0.0
    %175 = vmatprep.subr.mxu0 0.0
    %176 = vmatpush1.msra.mxu0 0.0
    %177 = vmatprep.subr.mxu0 0.0
    %178 = vmatpush1.msra.mxu0 0.0
    %179 = vmatprep.subr.mxu0 0.0
    %180 = vmatpush1.msra.mxu0 0.0
    %181 = vmatprep.subr.mxu0 0.0
    %182 = vmatpush1.msra.mxu0 0.0
    %183 = vmatprep.subr.mxu0 0.0
    %184 = vmatpush1.msra.mxu0 0.0
    %185 = vmatprep.subr.mxu0 0.0
    %186 = vmatpush1.msra.mxu0 0.0
    %187 = vmatprep.subr.mxu0 0.0
    %188 = vmatpush1.msra.mxu0 0.0
    %189 = vmatprep.subr.mxu0 0.0
    %190 = vmatpush1.msra.mxu0 0.0
    %191 = vmatprep.subr.mxu0 0.0
    %192 = vmatpush1.msra.mxu0 0.0
    %193 = vmatprep.subr.mxu0 0.0
    %194 = vmatpush1.msra.mxu0 0.0
    %195 = vmatprep.subr.mxu0 0.0
    %196 = vmatpush1.msra.mxu0 0.0
    %197 = vmatprep.subr.mxu0 %v134
    %198 = vmatpush1.msra.mxu0 %v133
    %199 = vmatprep.subr.mxu0 %v109
    %200 = vmatpush1.msra.mxu0 %v108
    %201 = vmatprep.subr.mxu0 0.0
    %202 = vmatpush2.msra.mxu0 0.0
    %203 = vmatprep.subr.mxu0 0.0
    %204 = vmatpush2.msra.mxu0 0.0
    %205 = vmatprep.subr.mxu0 0.0
    %206 = vmatpush2.msra.mxu0 0.0
    %207 = vmatprep.subr.mxu0 0.0
    %208 = vmatpush2.msra.mxu0 0.0
    %209 = vmatprep.subr.mxu0 0.0
    %210 = vmatpush2.msra.mxu0 0.0
    %211 = vmatprep.subr.mxu0 0.0
    %212 = vmatpush2.msra.mxu0 0.0
    %213 = vmatprep.subr.mxu0 0.0
    %214 = vmatpush2.msra.mxu0 0.0
    %215 = vmatprep.subr.mxu0 0.0
    %216 = vmatpush2.msra.mxu0 0.0
    %217 = vmatprep.subr.mxu0 0.0
    %218 = vmatpush2.msra.mxu0 0.0
    %219 = vmatprep.subr.mxu0 0.0
    %220 = vmatpush2.msra.mxu0 0.0
    %221 = vmatprep.subr.mxu0 0.0
    %222 = vmatpush2.msra.mxu0 0.0
    %223 = vmatprep.subr.mxu0 0.0
    %224 = vmatpush2.msra.mxu0 0.0
    %225 = vmatprep.subr.mxu0 0.0
    %226 = vmatpush2.msra.mxu0 0.0
    %227 = vmatprep.subr.mxu0 0.0
    %228 = vmatpush2.msra.mxu0 0.0
    %229 = vmatprep.subr.mxu0 0.0
    %230 = vmatpush2.msra.mxu0 0.0
    %231 = vmatprep.subr.mxu0 0.0
    %232 = vmatpush2.msra.mxu0 0.0
    %233 = vmatprep.mubr.f32.mxu0 0.0
    %234 = vmatmul.mubr.f32.gmra.mxu0 %v165
    %v235 = vpop.f32.mrf.mxu0
    %v236 = vadd.f32 0.0, %v235
    %v237 = vpop.f32.mrf.mxu0
    %v238 = vadd.f32 0.0, %v237
    %239 = vmatprep.mubr.f32.mxu0 0.0
    %240 = vmatmul.mubr.f32.gmra.mxu0 %v167
    %v241 = vpop.f32.mrf.mxu0
    %v242 = vadd.f32 0.0, %v241
    %v243 = vpop.f32.mrf.mxu0
    %v244 = vadd.f32 0.0, %v243
    %245 = vdwg.mxu0
    %246 = vmatprep.subr.mxu0 0.0
    %247 = vmatpush1.msra.mxu0 0.0
    %248 = vmatprep.subr.mxu0 0.0
    %249 = vmatpush1.msra.mxu0 0.0
    %250 = vmatprep.subr.mxu0 0.0
    %251 = vmatpush1.msra.mxu0 0.0
    %252 = vmatprep.subr.mxu0 0.0
    %253 = vmatpush1.msra.mxu0 0.0
    %254 = vmatprep.subr.mxu0 0.0
    %255 = vmatpush1.msra.mxu0 0.0
    %256 = vmatprep.subr.mxu0 0.0
    %257 = vmatpush1.msra.mxu0 0.0
    %258 = vmatprep.subr.mxu0 0.0
    %259 = vmatpush1.msra.mxu0 0.0
    %260 = vmatprep.subr.mxu0 0.0
    %261 = vmatpush1.msra.mxu0 0.0
    %262 = vmatprep.subr.mxu0 0.0
    %263 = vmatpush1.msra.mxu0 0.0
    %264 = vmatprep.subr.mxu0 0.0
    %265 = vmatpush1.msra.mxu0 0.0
    %266 = vmatprep.subr.mxu0 0.0
    %267 = vmatpush1.msra.mxu0 0.0
    %268 = vmatprep.subr.mxu0 0.0
    %269 = vmatpush1.msra.mxu0 0.0
    %270 = vmatprep.subr.mxu0 0.0
    %271 = vmatpush1.msra.mxu0 0.0
    %272 = vmatprep.subr.mxu0 0.0
    %273 = vmatpush1.msra.mxu0 0.0
    %274 = vmatprep.subr.mxu0 %v136
    %275 = vmatpush1.msra.mxu0 %v135
    %276 = vmatprep.subr.mxu0 %v111
    %277 = vmatpush1.msra.mxu0 %v110
    %278 = vmatprep.subr.mxu0 0.0
    %279 = vmatpush2.msra.mxu0 0.0
    %280 = vmatprep.subr.mxu0 0.0
    %281 = vmatpush2.msra.mxu0 0.0
    %282 = vmatprep.subr.mxu0 0.0
    %283 = vmatpush2.msra.mxu0 0.0
    %284 = vmatprep.subr.mxu0 0.0
    %285 = vmatpush2.msra.mxu0 0.0
    %286 = vmatprep.subr.mxu0 0.0
    %287 = vmatpush2.msra.mxu0 0.0
    %288 = vmatprep.subr.mxu0 0.0
    %289 = vmatpush2.msra.mxu0 0.0
    %290 = vmatprep.subr.mxu0 0.0
    %291 = vmatpush2.msra.mxu0 0.0
    %292 = vmatprep.subr.mxu0 0.0
    %293 = vmatpush2.msra.mxu0 0.0
    %294 = vmatprep.subr.mxu0 0.0
    %295 = vmatpush2.msra.mxu0 0.0
    %296 = vmatprep.subr.mxu0 0.0
    %297 = vmatpush2.msra.mxu0 0.0
    %298 = vmatprep.subr.mxu0 0.0
    %299 = vmatpush2.msra.mxu0 0.0
    %300 = vmatprep.subr.mxu0 0.0
    %301 = vmatpush2.msra.mxu0 0.0
    %302 = vmatprep.subr.mxu0 0.0
    %303 = vmatpush2.msra.mxu0 0.0
    %304 = vmatprep.subr.mxu0 0.0
    %305 = vmatpush2.msra.mxu0 0.0
    %306 = vmatprep.subr.mxu0 0.0
    %307 = vmatpush2.msra.mxu0 0.0
    %308 = vmatprep.subr.mxu0 0.0
    %309 = vmatpush2.msra.mxu0 0.0
    %310 = vmatprep.mubr.f32.mxu0 0.0
    %311 = vmatmul.mubr.f32.gmra.mxu0 %v165
    %v312 = vpop.f32.mrf.mxu0
    %v313 = vadd.f32 0.0, %v312
    %v314 = vpop.f32.mrf.mxu0
    %v315 = vadd.f32 0.0, %v314
    %316 = vmatprep.mubr.f32.mxu0 0.0
    %317 = vmatmul.mubr.f32.gmra.mxu0 %v167
    %v318 = vpop.f32.mrf.mxu0
    %v319 = vadd.f32 0.0, %v318
    %v320 = vpop.f32.mrf.mxu0
    %v321 = vadd.f32 0.0, %v320
    %322 = vdwg.mxu0
    %323 = vmatprep.subr.mxu0 0.0
    %324 = vmatpush1.msra.mxu0 0.0
    %325 = vmatprep.subr.mxu0 0.0
    %326 = vmatpush1.msra.mxu0 0.0
    %327 = vmatprep.subr.mxu0 0.0
    %328 = vmatpush1.msra.mxu0 0.0
    %329 = vmatprep.subr.mxu0 0.0
    %330 = vmatpush1.msra.mxu0 0.0
    %331 = vmatprep.subr.mxu0 0.0
    %332 = vmatpush1.msra.mxu0 0.0
    %333 = vmatprep.subr.mxu0 0.0
    %334 = vmatpush1.msra.mxu0 0.0
    %335 = vmatprep.subr.mxu0 0.0
    %336 = vmatpush1.msra.mxu0 0.0
    %337 = vmatprep.subr.mxu0 0.0
    %338 = vmatpush1.msra.mxu0 0.0
    %339 = vmatprep.subr.mxu0 0.0
    %340 = vmatpush1.msra.mxu0 0.0
    %341 = vmatprep.subr.mxu0 0.0
    %342 = vmatpush1.msra.mxu0 0.0
    %343 = vmatprep.subr.mxu0 0.0
    %344 = vmatpush1.msra.mxu0 0.0
    %345 = vmatprep.subr.mxu0 0.0
    %346 = vmatpush1.msra.mxu0 0.0
    %347 = vmatprep.subr.mxu0 0.0
    %348 = vmatpush1.msra.mxu0 0.0
    %349 = vmatprep.subr.mxu0 0.0
    %350 = vmatpush1.msra.mxu0 0.0
    %351 = vmatprep.subr.mxu0 %v138
    %352 = vmatpush1.msra.mxu0 %v137
    %353 = vmatprep.subr.mxu0 %v113
    %354 = vmatpush1.msra.mxu0 %v112
    %355 = vmatprep.subr.mxu0 0.0
    %356 = vmatpush2.msra.mxu0 0.0
    %357 = vmatprep.subr.mxu0 0.0
    %358 = vmatpush2.msra.mxu0 0.0
    %359 = vmatprep.subr.mxu0 0.0
    %360 = vmatpush2.msra.mxu0 0.0
    %361 = vmatprep.subr.mxu0 0.0
    %362 = vmatpush2.msra.mxu0 0.0
    %363 = vmatprep.subr.mxu0 0.0
    %364 = vmatpush2.msra.mxu0 0.0
    %365 = vmatprep.subr.mxu0 0.0
    %366 = vmatpush2.msra.mxu0 0.0
    %367 = vmatprep.subr.mxu0 0.0
    %368 = vmatpush2.msra.mxu0 0.0
    %369 = vmatprep.subr.mxu0 0.0
    %370 = vmatpush2.msra.mxu0 0.0
    %371 = vmatprep.subr.mxu0 0.0
    %372 = vmatpush2.msra.mxu0 0.0
    %373 = vmatprep.subr.mxu0 0.0
    %374 = vmatpush2.msra.mxu0 0.0
    %375 = vmatprep.subr.mxu0 0.0
    %376 = vmatpush2.msra.mxu0 0.0
    %377 = vmatprep.subr.mxu0 0.0
    %378 = vmatpush2.msra.mxu0 0.0
    %379 = vmatprep.subr.mxu0 0.0
    %380 = vmatpush2.msra.mxu0 0.0
    %381 = vmatprep.subr.mxu0 0.0
    %382 = vmatpush2.msra.mxu0 0.0
    %383 = vmatprep.subr.mxu0 0.0
    %384 = vmatpush2.msra.mxu0 0.0
    %385 = vmatprep.subr.mxu0 0.0
    %386 = vmatpush2.msra.mxu0 0.0
    %387 = vmatprep.mubr.f32.mxu0 0.0
    %388 = vmatmul.mubr.f32.gmra.mxu0 %v165
    %v389 = vpop.f32.mrf.mxu0
    %v390 = vadd.f32 0.0, %v389
    %v391 = vpop.f32.mrf.mxu0
    %v392 = vadd.f32 0.0, %v391
    %393 = vmatprep.mubr.f32.mxu0 0.0
    %394 = vmatmul.mubr.f32.gmra.mxu0 %v167
    %v395 = vpop.f32.mrf.mxu0
    %v396 = vadd.f32 0.0, %v395
    %v397 = vpop.f32.mrf.mxu0
    %v398 = vadd.f32 0.0, %v397
    %399 = vdwg.mxu0
    %400 = vmatprep.subr.mxu0 0.0
    %401 = vmatpush1.msra.mxu0 0.0
    %402 = vmatprep.subr.mxu0 0.0
    %403 = vmatpush1.msra.mxu0 0.0
    %404 = vmatprep.subr.mxu0 0.0
    %405 = vmatpush1.msra.mxu0 0.0
    %406 = vmatprep.subr.mxu0 0.0
    %407 = vmatpush1.msra.mxu0 0.0
    %408 = vmatprep.subr.mxu0 0.0
    %409 = vmatpush1.msra.mxu0 0.0
    %410 = vmatprep.subr.mxu0 0.0
    %411 = vmatpush1.msra.mxu0 0.0
    %412 = vmatprep.subr.mxu0 0.0
    %413 = vmatpush1.msra.mxu0 0.0
    %414 = vmatprep.subr.mxu0 0.0
    %415 = vmatpush1.msra.mxu0 0.0
    %416 = vmatprep.subr.mxu0 0.0
    %417 = vmatpush1.msra.mxu0 0.0
    %418 = vmatprep.subr.mxu0 0.0
    %419 = vmatpush1.msra.mxu0 0.0
    %420 = vmatprep.subr.mxu0 0.0
    %421 = vmatpush1.msra.mxu0 0.0
    %422 = vmatprep.subr.mxu0 0.0
    %423 = vmatpush1.msra.mxu0 0.0
    %424 = vmatprep.subr.mxu0 0.0
    %425 = vmatpush1.msra.mxu0 0.0
    %426 = vmatprep.subr.mxu0 0.0
    %427 = vmatpush1.msra.mxu0 0.0
    %428 = vmatprep.subr.mxu0 %v140
    %429 = vmatpush1.msra.mxu0 %v139
    %430 = vmatprep.subr.mxu0 %v115
    %431 = vmatpush1.msra.mxu0 %v114
    %432 = vmatprep.subr.mxu0 0.0
    %433 = vmatpush2.msra.mxu0 0.0
    %434 = vmatprep.subr.mxu0 0.0
    %435 = vmatpush2.msra.mxu0 0.0
    %436 = vmatprep.subr.mxu0 0.0
    %437 = vmatpush2.msra.mxu0 0.0
    %438 = vmatprep.subr.mxu0 0.0
    %439 = vmatpush2.msra.mxu0 0.0
    %440 = vmatprep.subr.mxu0 0.0
    %441 = vmatpush2.msra.mxu0 0.0
    %442 = vmatprep.subr.mxu0 0.0
    %443 = vmatpush2.msra.mxu0 0.0
    %444 = vmatprep.subr.mxu0 0.0
    %445 = vmatpush2.msra.mxu0 0.0
    %446 = vmatprep.subr.mxu0 0.0
    %447 = vmatpush2.msra.mxu0 0.0
    %448 = vmatprep.subr.mxu0 0.0
    %449 = vmatpush2.msra.mxu0 0.0
    %450 = vmatprep.subr.mxu0 0.0
    %451 = vmatpush2.msra.mxu0 0.0
    %452 = vmatprep.subr.mxu0 0.0
    %453 = vmatpush2.msra.mxu0 0.0
    %454 = vmatprep.subr.mxu0 0.0
    %455 = vmatpush2.msra.mxu0 0.0
    %456 = vmatprep.subr.mxu0 0.0
    %457 = vmatpush2.msra.mxu0 0.0
    %458 = vmatprep.subr.mxu0 0.0
    %459 = vmatpush2.msra.mxu0 0.0
    %460 = vmatprep.subr.mxu0 0.0
    %461 = vmatpush2.msra.mxu0 0.0
    %462 = vmatprep.subr.mxu0 0.0
    %463 = vmatpush2.msra.mxu0 0.0
    %464 = vmatprep.mubr.f32.mxu0 0.0
    %465 = vmatmul.mubr.f32.gmra.mxu0 %v165
    %v466 = vpop.f32.mrf.mxu0
    %v467 = vadd.f32 0.0, %v466
    %v468 = vpop.f32.mrf.mxu0
    %v469 = vadd.f32 0.0, %v468
    %470 = vmatprep.mubr.f32.mxu0 0.0
    %471 = vmatmul.mubr.f32.gmra.mxu0 %v167
    %v472 = vpop.f32.mrf.mxu0
    %v473 = vadd.f32 0.0, %v472
    %v474 = vpop.f32.mrf.mxu0
    %v475 = vadd.f32 0.0, %v474
    %476 = vdwg.mxu0
    %477 = vmatprep.subr.mxu0 0.0
    %478 = vmatpush1.msra.mxu0 0.0
    %479 = vmatprep.subr.mxu0 0.0
    %480 = vmatpush1.msra.mxu0 0.0
    %481 = vmatprep.subr.mxu0 0.0
    %482 = vmatpush1.msra.mxu0 0.0
    %483 = vmatprep.subr.mxu0 0.0
    %484 = vmatpush1.msra.mxu0 0.0
    %485 = vmatprep.subr.mxu0 0.0
    %486 = vmatpush1.msra.mxu0 0.0
    %487 = vmatprep.subr.mxu0 0.0
    %488 = vmatpush1.msra.mxu0 0.0
    %489 = vmatprep.subr.mxu0 0.0
    %490 = vmatpush1.msra.mxu0 0.0
    %491 = vmatprep.subr.mxu0 0.0
    %492 = vmatpush1.msra.mxu0 0.0
    %493 = vmatprep.subr.mxu0 0.0
    %494 = vmatpush1.msra.mxu0 0.0
    %495 = vmatprep.subr.mxu0 0.0
    %496 = vmatpush1.msra.mxu0 0.0
    %497 = vmatprep.subr.mxu0 0.0
    %498 = vmatpush1.msra.mxu0 0.0
    %499 = vmatprep.subr.mxu0 0.0
    %500 = vmatpush1.msra.mxu0 0.0
    %501 = vmatprep.subr.mxu0 0.0
    %502 = vmatpush1.msra.mxu0 0.0
    %503 = vmatprep.subr.mxu0 0.0
    %504 = vmatpush1.msra.mxu0 0.0
    %505 = vmatprep.subr.mxu0 %v142
    %506 = vmatpush1.msra.mxu0 %v141
    %507 = vmatprep.subr.mxu0 %v117
    %508 = vmatpush1.msra.mxu0 %v116
    %509 = vmatprep.subr.mxu0 0.0
    %510 = vmatpush2.msra.mxu0 0.0
    %511 = vmatprep.subr.mxu0 0.0
    %512 = vmatpush2.msra.mxu0 0.0
    %513 = vmatprep.subr.mxu0 0.0
    %514 = vmatpush2.msra.mxu0 0.0
    %515 = vmatprep.subr.mxu0 0.0
    %516 = vmatpush2.msra.mxu0 0.0
    %517 = vmatprep.subr.mxu0 0.0
    %518 = vmatpush2.msra.mxu0 0.0
    %519 = vmatprep.subr.mxu0 0.0
    %520 = vmatpush2.msra.mxu0 0.0
    %521 = vmatprep.subr.mxu0 0.0
    %522 = vmatpush2.msra.mxu0 0.0
    %523 = vmatprep.subr.mxu0 0.0
    %524 = vmatpush2.msra.mxu0 0.0
    %525 = vmatprep.subr.mxu0 0.0
    %526 = vmatpush2.msra.mxu0 0.0
    %527 = vmatprep.subr.mxu0 0.0
    %528 = vmatpush2.msra.mxu0 0.0
    %529 = vmatprep.subr.mxu0 0.0
    %530 = vmatpush2.msra.mxu0 0.0
    %531 = vmatprep.subr.mxu0 0.0
    %532 = vmatpush2.msra.mxu0 0.0
    %533 = vmatprep.subr.mxu0 0.0
    %534 = vmatpush2.msra.mxu0 0.0
    %535 = vmatprep.subr.mxu0 0.0
    %536 = vmatpush2.msra.mxu0 0.0
    %537 = vmatprep.subr.mxu0 0.0
    %538 = vmatpush2.msra.mxu0 0.0
    %539 = vmatprep.subr.mxu0 0.0
    %540 = vmatpush2.msra.mxu0 0.0
    %541 = vmatprep.mubr.f32.mxu0 0.0
    %542 = vmatmul.mubr.f32.gmra.mxu0 %v165
    %v543 = vpop.f32.mrf.mxu0
    %v544 = vadd.f32 0.0, %v543
    %v545 = vpop.f32.mrf.mxu0
    %v546 = vadd.f32 0.0, %v545
    %547 = vmatprep.mubr.f32.mxu0 0.0
    %548 = vmatmul.mubr.f32.gmra.mxu0 %v167
    %v549 = vpop.f32.mrf.mxu0
    %v550 = vadd.f32 0.0, %v549
    %v551 = vpop.f32.mrf.mxu0
    %v552 = vadd.f32 0.0, %v551
    %553 = vdwg.mxu0
    %554 = vmatprep.subr.mxu0 0.0
    %555 = vmatpush1.msra.mxu0 0.0
    %556 = vmatprep.subr.mxu0 0.0
    %557 = vmatpush1.msra.mxu0 0.0
    %558 = vmatprep.subr.mxu0 0.0
    %559 = vmatpush1.msra.mxu0 0.0
    %560 = vmatprep.subr.mxu0 0.0
    %561 = vmatpush1.msra.mxu0 0.0
    %562 = vmatprep.subr.mxu0 0.0
    %563 = vmatpush1.msra.mxu0 0.0
    %564 = vmatprep.subr.mxu0 0.0
    %565 = vmatpush1.msra.mxu0 0.0
    %566 = vmatprep.subr.mxu0 0.0
    %567 = vmatpush1.msra.mxu0 0.0
    %568 = vmatprep.subr.mxu0 0.0
    %569 = vmatpush1.msra.mxu0 0.0
    %570 = vmatprep.subr.mxu0 0.0
    %571 = vmatpush1.msra.mxu0 0.0
    %572 = vmatprep.subr.mxu0 0.0
    %573 = vmatpush1.msra.mxu0 0.0
    %574 = vmatprep.subr.mxu0 0.0
    %575 = vmatpush1.msra.mxu0 0.0
    %576 = vmatprep.subr.mxu0 0.0
    %577 = vmatpush1.msra.mxu0 0.0
    %578 = vmatprep.subr.mxu0 0.0
    %579 = vmatpush1.msra.mxu0 0.0
    %580 = vmatprep.subr.mxu0 0.0
    %581 = vmatpush1.msra.mxu0 0.0
    %582 = vmatprep.subr.mxu0 %v144
    %583 = vmatpush1.msra.mxu0 %v143
    %584 = vmatprep.subr.mxu0 %v119
    %585 = vmatpush1.msra.mxu0 %v118
    %586 = vmatprep.subr.mxu0 0.0
    %587 = vmatpush2.msra.mxu0 0.0
    %588 = vmatprep.subr.mxu0 0.0
    %589 = vmatpush2.msra.mxu0 0.0
    %590 = vmatprep.subr.mxu0 0.0
    %591 = vmatpush2.msra.mxu0 0.0
    %592 = vmatprep.subr.mxu0 0.0
    %593 = vmatpush2.msra.mxu0 0.0
    %594 = vmatprep.subr.mxu0 0.0
    %595 = vmatpush2.msra.mxu0 0.0
    %596 = vmatprep.subr.mxu0 0.0
    %597 = vmatpush2.msra.mxu0 0.0
    %598 = vmatprep.subr.mxu0 0.0
    %599 = vmatpush2.msra.mxu0 0.0
    %600 = vmatprep.subr.mxu0 0.0
    %601 = vmatpush2.msra.mxu0 0.0
    %602 = vmatprep.subr.mxu0 0.0
    %603 = vmatpush2.msra.mxu0 0.0
    %604 = vmatprep.subr.mxu0 0.0
    %605 = vmatpush2.msra.mxu0 0.0
    %606 = vmatprep.subr.mxu0 0.0
    %607 = vmatpush2.msra.mxu0 0.0
    %608 = vmatprep.subr.mxu0 0.0
    %609 = vmatpush2.msra.mxu0 0.0
    %610 = vmatprep.subr.mxu0 0.0
    %611 = vmatpush2.msra.mxu0 0.0
    %612 = vmatprep.subr.mxu0 0.0
    %613 = vmatpush2.msra.mxu0 0.0
    %614 = vmatprep.subr.mxu0 0.0
    %615 = vmatpush2.msra.mxu0 0.0
    %616 = vmatprep.subr.mxu0 0.0
    %617 = vmatpush2.msra.mxu0 0.0
    %618 = vmatprep.mubr.f32.mxu0 0.0
    %619 = vmatmul.mubr.f32.gmra.mxu0 %v165
    %v620 = vpop.f32.mrf.mxu0
    %v621 = vadd.f32 0.0, %v620
    %v622 = vpop.f32.mrf.mxu0
    %v623 = vadd.f32 0.0, %v622
    %624 = vmatprep.mubr.f32.mxu0 0.0
    %625 = vmatmul.mubr.f32.gmra.mxu0 %v167
    %v626 = vpop.f32.mrf.mxu0
    %v627 = vadd.f32 0.0, %v626
    %v628 = vpop.f32.mrf.mxu0
    %v629 = vadd.f32 0.0, %v628
    %630 = vdwg.mxu0
    %631 = vmatprep.subr.mxu0 0.0
    %632 = vmatpush1.msra.mxu0 0.0
    %633 = vmatprep.subr.mxu0 0.0
    %634 = vmatpush1.msra.mxu0 0.0
    %635 = vmatprep.subr.mxu0 0.0
    %636 = vmatpush1.msra.mxu0 0.0
    %637 = vmatprep.subr.mxu0 0.0
    %638 = vmatpush1.msra.mxu0 0.0
    %639 = vmatprep.subr.mxu0 0.0
    %640 = vmatpush1.msra.mxu0 0.0
    %641 = vmatprep.subr.mxu0 0.0
    %642 = vmatpush1.msra.mxu0 0.0
    %643 = vmatprep.subr.mxu0 0.0
    %644 = vmatpush1.msra.mxu0 0.0
    %645 = vmatprep.subr.mxu0 0.0
    %646 = vmatpush1.msra.mxu0 0.0
    %647 = vmatprep.subr.mxu0 0.0
    %648 = vmatpush1.msra.mxu0 0.0
    %649 = vmatprep.subr.mxu0 0.0
    %650 = vmatpush1.msra.mxu0 0.0
    %651 = vmatprep.subr.mxu0 0.0
    %652 = vmatpush1.msra.mxu0 0.0
    %653 = vmatprep.subr.mxu0 0.0
    %654 = vmatpush1.msra.mxu0 0.0
    %655 = vmatprep.subr.mxu0 0.0
    %656 = vmatpush1.msra.mxu0 0.0
    %657 = vmatprep.subr.mxu0 0.0
    %658 = vmatpush1.msra.mxu0 0.0
    %659 = vmatprep.subr.mxu0 %v146
    %660 = vmatpush1.msra.mxu0 %v145
    %661 = vmatprep.subr.mxu0 %v121
    %662 = vmatpush1.msra.mxu0 %v120
    %663 = vmatprep.subr.mxu0 0.0
    %664 = vmatpush2.msra.mxu0 0.0
    %665 = vmatprep.subr.mxu0 0.0
    %666 = vmatpush2.msra.mxu0 0.0
    %667 = vmatprep.subr.mxu0 0.0
    %668 = vmatpush2.msra.mxu0 0.0
    %669 = vmatprep.subr.mxu0 0.0
    %670 = vmatpush2.msra.mxu0 0.0
    %671 = vmatprep.subr.mxu0 0.0
    %672 = vmatpush2.msra.mxu0 0.0
    %673 = vmatprep.subr.mxu0 0.0
    %674 = vmatpush2.msra.mxu0 0.0
    %675 = vmatprep.subr.mxu0 0.0
    %676 = vmatpush2.msra.mxu0 0.0
    %677 = vmatprep.subr.mxu0 0.0
    %678 = vmatpush2.msra.mxu0 0.0
    %679 = vmatprep.subr.mxu0 0.0
    %680 = vmatpush2.msra.mxu0 0.0
    %681 = vmatprep.subr.mxu0 0.0
    %682 = vmatpush2.msra.mxu0 0.0
    %683 = vmatprep.subr.mxu0 0.0
    %684 = vmatpush2.msra.mxu0 0.0
    %685 = vmatprep.subr.mxu0 0.0
    %686 = vmatpush2.msra.mxu0 0.0
    %687 = vmatprep.subr.mxu0 0.0
    %688 = vmatpush2.msra.mxu0 0.0
    %689 = vmatprep.subr.mxu0 0.0
    %690 = vmatpush2.msra.mxu0 0.0
    %691 = vmatprep.subr.mxu0 0.0
    %692 = vmatpush2.msra.mxu0 0.0
    %693 = vmatprep.subr.mxu0 0.0
    %694 = vmatpush2.msra.mxu0 0.0
    %695 = vmatprep.mubr.f32.mxu0 0.0
    %696 = vmatmul.mubr.f32.gmra.mxu0 %v165
    %v697 = vpop.f32.mrf.mxu0
    %v698 = vadd.f32 0.0, %v697
    %v699 = vpop.f32.mrf.mxu0
    %v700 = vadd.f32 0.0, %v699
    %701 = vmatprep.mubr.f32.mxu0 0.0
    %702 = vmatmul.mubr.f32.gmra.mxu0 %v167
    %v703 = vpop.f32.mrf.mxu0
    %v704 = vadd.f32 0.0, %v703
    %v705 = vpop.f32.mrf.mxu0
    %v706 = vadd.f32 0.0, %v705
    %707 = vdwg.mxu0
    %708 = vmatprep.subr.mxu0 0.0
    %709 = vmatpush1.msra.mxu0 0.0
    %710 = vmatprep.subr.mxu0 0.0
    %711 = vmatpush1.msra.mxu0 0.0
    %712 = vmatprep.subr.mxu0 0.0
    %713 = vmatpush1.msra.mxu0 0.0
    %714 = vmatprep.subr.mxu0 0.0
    %715 = vmatpush1.msra.mxu0 0.0
    %716 = vmatprep.subr.mxu0 0.0
    %717 = vmatpush1.msra.mxu0 0.0
    %718 = vmatprep.subr.mxu0 0.0
    %719 = vmatpush1.msra.mxu0 0.0
    %720 = vmatprep.subr.mxu0 0.0
    %721 = vmatpush1.msra.mxu0 0.0
    %722 = vmatprep.subr.mxu0 0.0
    %723 = vmatpush1.msra.mxu0 0.0
    %724 = vmatprep.subr.mxu0 0.0
    %725 = vmatpush1.msra.mxu0 0.0
    %726 = vmatprep.subr.mxu0 0.0
    %727 = vmatpush1.msra.mxu0 0.0
    %728 = vmatprep.subr.mxu0 0.0
    %729 = vmatpush1.msra.mxu0 0.0
    %730 = vmatprep.subr.mxu0 0.0
    %731 = vmatpush1.msra.mxu0 0.0
    %732 = vmatprep.subr.mxu0 0.0
    %733 = vmatpush1.msra.mxu0 0.0
    %734 = vmatprep.subr.mxu0 0.0
    %735 = vmatpush1.msra.mxu0 0.0
    %736 = vmatprep.subr.mxu0 %v148
    %737 = vmatpush1.msra.mxu0 %v147
    %738 = vmatprep.subr.mxu0 %v123
    %739 = vmatpush1.msra.mxu0 %v122
    %740 = vmatprep.subr.mxu0 0.0
    %741 = vmatpush2.msra.mxu0 0.0
    %742 = vmatprep.subr.mxu0 0.0
    %743 = vmatpush2.msra.mxu0 0.0
    %744 = vmatprep.subr.mxu0 0.0
    %745 = vmatpush2.msra.mxu0 0.0
    %746 = vmatprep.subr.mxu0 0.0
    %747 = vmatpush2.msra.mxu0 0.0
    %748 = vmatprep.subr.mxu0 0.0
    %749 = vmatpush2.msra.mxu0 0.0
    %750 = vmatprep.subr.mxu0 0.0
    %751 = vmatpush2.msra.mxu0 0.0
    %752 = vmatprep.subr.mxu0 0.0
    %753 = vmatpush2.msra.mxu0 0.0
    %754 = vmatprep.subr.mxu0 0.0
    %755 = vmatpush2.msra.mxu0 0.0
    %756 = vmatprep.subr.mxu0 0.0
    %757 = vmatpush2.msra.mxu0 0.0
    %758 = vmatprep.subr.mxu0 0.0
    %759 = vmatpush2.msra.mxu0 0.0
    %760 = vmatprep.subr.mxu0 0.0
    %761 = vmatpush2.msra.mxu0 0.0
    %762 = vmatprep.subr.mxu0 0.0
    %763 = vmatpush2.msra.mxu0 0.0
    %764 = vmatprep.subr.mxu0 0.0
    %765 = vmatpush2.msra.mxu0 0.0
    %766 = vmatprep.subr.mxu0 0.0
    %767 = vmatpush2.msra.mxu0 0.0
    %768 = vmatprep.subr.mxu0 0.0
    %769 = vmatpush2.msra.mxu0 0.0
    %770 = vmatprep.subr.mxu0 0.0
    %771 = vmatpush2.msra.mxu0 0.0
    %772 = vmatprep.mubr.f32.mxu0 0.0
    %773 = vmatmul.mubr.f32.gmra.mxu0 %v165
    %v774 = vpop.f32.mrf.mxu0
    %v775 = vadd.f32 0.0, %v774
    %v776 = vpop.f32.mrf.mxu0
    %v777 = vadd.f32 0.0, %v776
    %778 = vmatprep.mubr.f32.mxu0 0.0
    %779 = vmatmul.mubr.f32.gmra.mxu0 %v167
    %v780 = vpop.f32.mrf.mxu0
    %v781 = vadd.f32 0.0, %v780
    %v782 = vpop.f32.mrf.mxu0
    %v783 = vadd.f32 0.0, %v782
    %784 = vdwg.mxu0
    %785 = vmatprep.subr.mxu0 0.0
    %786 = vmatpush1.msra.mxu0 0.0
    %787 = vmatprep.subr.mxu0 0.0
    %788 = vmatpush1.msra.mxu0 0.0
    %789 = vmatprep.subr.mxu0 0.0
    %790 = vmatpush1.msra.mxu0 0.0
    %791 = vmatprep.subr.mxu0 0.0
    %792 = vmatpush1.msra.mxu0 0.0
    %793 = vmatprep.subr.mxu0 0.0
    %794 = vmatpush1.msra.mxu0 0.0
    %795 = vmatprep.subr.mxu0 0.0
    %796 = vmatpush1.msra.mxu0 0.0
    %797 = vmatprep.subr.mxu0 0.0
    %798 = vmatpush1.msra.mxu0 0.0
    %799 = vmatprep.subr.mxu0 0.0
    %800 = vmatpush1.msra.mxu0 0.0
    %801 = vmatprep.subr.mxu0 0.0
    %802 = vmatpush1.msra.mxu0 0.0
    %803 = vmatprep.subr.mxu0 0.0
    %804 = vmatpush1.msra.mxu0 0.0
    %805 = vmatprep.subr.mxu0 0.0
    %806 = vmatpush1.msra.mxu0 0.0
    %807 = vmatprep.subr.mxu0 0.0
    %808 = vmatpush1.msra.mxu0 0.0
    %809 = vmatprep.subr.mxu0 0.0
    %810 = vmatpush1.msra.mxu0 0.0
    %811 = vmatprep.subr.mxu0 0.0
    %812 = vmatpush1.msra.mxu0 0.0
    %813 = vmatprep.subr.mxu0 %v150
    %814 = vmatpush1.msra.mxu0 %v149
    %815 = vmatprep.subr.mxu0 %v125
    %816 = vmatpush1.msra.mxu0 %v124
    %817 = vmatprep.subr.mxu0 0.0
    %818 = vmatpush2.msra.mxu0 0.0
    %819 = vmatprep.subr.mxu0 0.0
    %820 = vmatpush2.msra.mxu0 0.0
    %821 = vmatprep.subr.mxu0 0.0
    %822 = vmatpush2.msra.mxu0 0.0
    %823 = vmatprep.subr.mxu0 0.0
    %824 = vmatpush2.msra.mxu0 0.0
    %825 = vmatprep.subr.mxu0 0.0
    %826 = vmatpush2.msra.mxu0 0.0
    %827 = vmatprep.subr.mxu0 0.0
    %828 = vmatpush2.msra.mxu0 0.0
    %829 = vmatprep.subr.mxu0 0.0
    %830 = vmatpush2.msra.mxu0 0.0
    %831 = vmatprep.subr.mxu0 0.0
    %832 = vmatpush2.msra.mxu0 0.0
    %833 = vmatprep.subr.mxu0 0.0
    %834 = vmatpush2.msra.mxu0 0.0
    %835 = vmatprep.subr.mxu0 0.0
    %836 = vmatpush2.msra.mxu0 0.0
    %837 = vmatprep.subr.mxu0 0.0
    %838 = vmatpush2.msra.mxu0 0.0
    %839 = vmatprep.subr.mxu0 0.0
    %840 = vmatpush2.msra.mxu0 0.0
    %841 = vmatprep.subr.mxu0 0.0
    %842 = vmatpush2.msra.mxu0 0.0
    %843 = vmatprep.subr.mxu0 0.0
    %844 = vmatpush2.msra.mxu0 0.0
    %845 = vmatprep.subr.mxu0 0.0
    %846 = vmatpush2.msra.mxu0 0.0
    %847 = vmatprep.subr.mxu0 0.0
    %848 = vmatpush2.msra.mxu0 0.0
    %849 = vmatprep.mubr.f32.mxu0 0.0
    %850 = vmatmul.mubr.f32.gmra.mxu0 %v165
    %v851 = vpop.f32.mrf.mxu0
    %v852 = vadd.f32 0.0, %v851
    %v853 = vpop.f32.mrf.mxu0
    %v854 = vadd.f32 0.0, %v853
    %855 = vmatprep.mubr.f32.mxu0 0.0
    %856 = vmatmul.mubr.f32.gmra.mxu0 %v167
    %v857 = vpop.f32.mrf.mxu0
    %v858 = vadd.f32 0.0, %v857
    %v859 = vpop.f32.mrf.mxu0
    %v860 = vadd.f32 0.0, %v859
    %861 = vdwg.mxu0
    %862 = vmatprep.subr.mxu0 0.0
    %863 = vmatpush1.msra.mxu0 0.0
    %864 = vmatprep.subr.mxu0 0.0
    %865 = vmatpush1.msra.mxu0 0.0
    %866 = vmatprep.subr.mxu0 0.0
    %867 = vmatpush1.msra.mxu0 0.0
    %868 = vmatprep.subr.mxu0 0.0
    %869 = vmatpush1.msra.mxu0 0.0
    %870 = vmatprep.subr.mxu0 0.0
    %871 = vmatpush1.msra.mxu0 0.0
    %872 = vmatprep.subr.mxu0 0.0
    %873 = vmatpush1.msra.mxu0 0.0
    %874 = vmatprep.subr.mxu0 0.0
    %875 = vmatpush1.msra.mxu0 0.0
    %876 = vmatprep.subr.mxu0 0.0
    %877 = vmatpush1.msra.mxu0 0.0
    %878 = vmatprep.subr.mxu0 0.0
    %879 = vmatpush1.msra.mxu0 0.0
    %880 = vmatprep.subr.mxu0 0.0
    %881 = vmatpush1.msra.mxu0 0.0
    %882 = vmatprep.subr.mxu0 0.0
    %883 = vmatpush1.msra.mxu0 0.0
    %884 = vmatprep.subr.mxu0 0.0
    %885 = vmatpush1.msra.mxu0 0.0
    %886 = vmatprep.subr.mxu0 0.0
    %887 = vmatpush1.msra.mxu0 0.0
    %888 = vmatprep.subr.mxu0 0.0
    %889 = vmatpush1.msra.mxu0 0.0
    %890 = vmatprep.subr.mxu0 %v152
    %891 = vmatpush1.msra.mxu0 %v151
    %892 = vmatprep.subr.mxu0 %v127
    %893 = vmatpush1.msra.mxu0 %v126
    %894 = vmatprep.subr.mxu0 0.0
    %895 = vmatpush2.msra.mxu0 0.0
    %896 = vmatprep.subr.mxu0 0.0
    %897 = vmatpush2.msra.mxu0 0.0
    %898 = vmatprep.subr.mxu0 0.0
    %899 = vmatpush2.msra.mxu0 0.0
    %900 = vmatprep.subr.mxu0 0.0
    %901 = vmatpush2.msra.mxu0 0.0
    %902 = vmatprep.subr.mxu0 0.0
    %903 = vmatpush2.msra.mxu0 0.0
    %904 = vmatprep.subr.mxu0 0.0
    %905 = vmatpush2.msra.mxu0 0.0
    %906 = vmatprep.subr.mxu0 0.0
    %907 = vmatpush2.msra.mxu0 0.0
    %908 = vmatprep.subr.mxu0 0.0
    %909 = vmatpush2.msra.mxu0 0.0
    %910 = vmatprep.subr.mxu0 0.0
    %911 = vmatpush2.msra.mxu0 0.0
    %912 = vmatprep.subr.mxu0 0.0
    %913 = vmatpush2.msra.mxu0 0.0
    %914 = vmatprep.subr.mxu0 0.0
    %915 = vmatpush2.msra.mxu0 0.0
    %916 = vmatprep.subr.mxu0 0.0
    %917 = vmatpush2.msra.mxu0 0.0
    %918 = vmatprep.subr.mxu0 0.0
    %919 = vmatpush2.msra.mxu0 0.0
    %920 = vmatprep.subr.mxu0 0.0
    %921 = vmatpush2.msra.mxu0 0.0
    %922 = vmatprep.subr.mxu0 0.0
    %923 = vmatpush2.msra.mxu0 0.0
    %924 = vmatprep.subr.mxu0 0.0
    %925 = vmatpush2.msra.mxu0 0.0
    %926 = vmatprep.mubr.f32.mxu0 0.0
    %927 = vmatmul.mubr.f32.gmra.mxu0 %v165
    %v928 = vpop.f32.mrf.mxu0
    %v929 = vadd.f32 0.0, %v928
    %v930 = vpop.f32.mrf.mxu0
    %v931 = vadd.f32 0.0, %v930
    %932 = vmatprep.mubr.f32.mxu0 0.0
    %933 = vmatmul.mubr.f32.gmra.mxu0 %v167
    %v934 = vpop.f32.mrf.mxu0
    %v935 = vadd.f32 0.0, %v934
    %v936 = vpop.f32.mrf.mxu0
    %v937 = vadd.f32 0.0, %v936
    %938 = vdwg.mxu0
    %939 = vmatprep.subr.mxu0 0.0
    %940 = vmatpush1.msra.mxu0 0.0
    %941 = vmatprep.subr.mxu0 0.0
    %942 = vmatpush1.msra.mxu0 0.0
    %943 = vmatprep.subr.mxu0 0.0
    %944 = vmatpush1.msra.mxu0 0.0
    %945 = vmatprep.subr.mxu0 0.0
    %946 = vmatpush1.msra.mxu0 0.0
    %947 = vmatprep.subr.mxu0 0.0
    %948 = vmatpush1.msra.mxu0 0.0
    %949 = vmatprep.subr.mxu0 0.0
    %950 = vmatpush1.msra.mxu0 0.0
    %951 = vmatprep.subr.mxu0 0.0
    %952 = vmatpush1.msra.mxu0 0.0
    %953 = vmatprep.subr.mxu0 0.0
    %954 = vmatpush1.msra.mxu0 0.0
    %955 = vmatprep.subr.mxu0 0.0
    %956 = vmatpush1.msra.mxu0 0.0
    %957 = vmatprep.subr.mxu0 0.0
    %958 = vmatpush1.msra.mxu0 0.0
    %959 = vmatprep.subr.mxu0 0.0
    %960 = vmatpush1.msra.mxu0 0.0
    %961 = vmatprep.subr.mxu0 0.0
    %962 = vmatpush1.msra.mxu0 0.0
    %963 = vmatprep.subr.mxu0 0.0
    %964 = vmatpush1.msra.mxu0 0.0
    %965 = vmatprep.subr.mxu0 0.0
    %966 = vmatpush1.msra.mxu0 0.0
    %967 = vmatprep.subr.mxu0 %v154
    %968 = vmatpush1.msra.mxu0 %v153
    %969 = vmatprep.subr.mxu0 %v129
    %970 = vmatpush1.msra.mxu0 %v128
    %971 = vmatprep.subr.mxu0 0.0
    %972 = vmatpush2.msra.mxu0 0.0
    %973 = vmatprep.subr.mxu0 0.0
    %974 = vmatpush2.msra.mxu0 0.0
    %975 = vmatprep.subr.mxu0 0.0
    %976 = vmatpush2.msra.mxu0 0.0
    %977 = vmatprep.subr.mxu0 0.0
    %978 = vmatpush2.msra.mxu0 0.0
    %979 = vmatprep.subr.mxu0 0.0
    %980 = vmatpush2.msra.mxu0 0.0
    %981 = vmatprep.subr.mxu0 0.0
    %982 = vmatpush2.msra.mxu0 0.0
    %983 = vmatprep.subr.mxu0 0.0
    %984 = vmatpush2.msra.mxu0 0.0
    %985 = vmatprep.subr.mxu0 0.0
    %986 = vmatpush2.msra.mxu0 0.0
    %987 = vmatprep.subr.mxu0 0.0
    %988 = vmatpush2.msra.mxu0 0.0
    %989 = vmatprep.subr.mxu0 0.0
    %990 = vmatpush2.msra.mxu0 0.0
    %991 = vmatprep.subr.mxu0 0.0
    %992 = vmatpush2.msra.mxu0 0.0
    %993 = vmatprep.subr.mxu0 0.0
    %994 = vmatpush2.msra.mxu0 0.0
    %995 = vmatprep.subr.mxu0 0.0
    %996 = vmatpush2.msra.mxu0 0.0
    %997 = vmatprep.subr.mxu0 0.0
    %998 = vmatpush2.msra.mxu0 0.0
    %999 = vmatprep.subr.mxu0 0.0
    %1000 = vmatpush2.msra.mxu0 0.0
    %1001 = vmatprep.subr.mxu0 0.0
    %1002 = vmatpush2.msra.mxu0 0.0
    %1003 = vmatprep.mubr.f32.mxu0 0.0
    %1004 = vmatmul.mubr.f32.gmra.mxu0 %v165
    %v1005 = vpop.f32.mrf.mxu0
    %v1006 = vadd.f32 0.0, %v1005
    %v1007 = vpop.f32.mrf.mxu0
    %v1008 = vadd.f32 0.0, %v1007
    %1009 = vmatprep.mubr.f32.mxu0 0.0
    %1010 = vmatmul.mubr.f32.gmra.mxu0 %v167
    %v1011 = vpop.f32.mrf.mxu0
    %v1012 = vadd.f32 0.0, %v1011
    %v1013 = vpop.f32.mrf.mxu0
    %v1014 = vadd.f32 0.0, %v1013
    %1015 = vdwg.mxu0
    %1016 = vmatprep.subr.mxu0 0.0
    %1017 = vmatpush1.msra.mxu0 0.0
    %1018 = vmatprep.subr.mxu0 0.0
    %1019 = vmatpush1.msra.mxu0 0.0
    %1020 = vmatprep.subr.mxu0 0.0
    %1021 = vmatpush1.msra.mxu0 0.0
    %1022 = vmatprep.subr.mxu0 0.0
    %1023 = vmatpush1.msra.mxu0 0.0
    %1024 = vmatprep.subr.mxu0 0.0
    %1025 = vmatpush1.msra.mxu0 0.0
    %1026 = vmatprep.subr.mxu0 0.0
    %1027 = vmatpush1.msra.mxu0 0.0
    %1028 = vmatprep.subr.mxu0 0.0
    %1029 = vmatpush1.msra.mxu0 0.0
    %1030 = vmatprep.subr.mxu0 0.0
    %1031 = vmatpush1.msra.mxu0 0.0
    %1032 = vmatprep.subr.mxu0 0.0
    %1033 = vmatpush1.msra.mxu0 0.0
    %1034 = vmatprep.subr.mxu0 0.0
    %1035 = vmatpush1.msra.mxu0 0.0
    %1036 = vmatprep.subr.mxu0 0.0
    %1037 = vmatpush1.msra.mxu0 0.0
    %1038 = vmatprep.subr.mxu0 0.0
    %1039 = vmatpush1.msra.mxu0 0.0
    %1040 = vmatprep.subr.mxu0 0.0
    %1041 = vmatpush1.msra.mxu0 0.0
    %1042 = vmatprep.subr.mxu0 0.0
    %1043 = vmatpush1.msra.mxu0 0.0
    %1044 = vmatprep.subr.mxu0 %v156
    %1045 = vmatpush1.msra.mxu0 %v155
    %1046 = vmatprep.subr.mxu0 %v131
    %1047 = vmatpush1.msra.mxu0 %v130
    %1048 = vmatprep.subr.mxu0 0.0
    %1049 = vmatpush2.msra.mxu0 0.0
    %1050 = vmatprep.subr.mxu0 0.0
    %1051 = vmatpush2.msra.mxu0 0.0
    %1052 = vmatprep.subr.mxu0 0.0
    %1053 = vmatpush2.msra.mxu0 0.0
    %1054 = vmatprep.subr.mxu0 0.0
    %1055 = vmatpush2.msra.mxu0 0.0
    %1056 = vmatprep.subr.mxu0 0.0
    %1057 = vmatpush2.msra.mxu0 0.0
    %1058 = vmatprep.subr.mxu0 0.0
    %1059 = vmatpush2.msra.mxu0 0.0
    %1060 = vmatprep.subr.mxu0 0.0
    %1061 = vmatpush2.msra.mxu0 0.0
    %1062 = vmatprep.subr.mxu0 0.0
    %1063 = vmatpush2.msra.mxu0 0.0
    %1064 = vmatprep.subr.mxu0 0.0
    %1065 = vmatpush2.msra.mxu0 0.0
    %1066 = vmatprep.subr.mxu0 0.0
    %1067 = vmatpush2.msra.mxu0 0.0
    %1068 = vmatprep.subr.mxu0 0.0
    %1069 = vmatpush2.msra.mxu0 0.0
    %1070 = vmatprep.subr.mxu0 0.0
    %1071 = vmatpush2.msra.mxu0 0.0
    %1072 = vmatprep.subr.mxu0 0.0
    %1073 = vmatpush2.msra.mxu0 0.0
    %1074 = vmatprep.subr.mxu0 0.0
    %1075 = vmatpush2.msra.mxu0 0.0
    %1076 = vmatprep.subr.mxu0 0.0
    %1077 = vmatpush2.msra.mxu0 0.0
    %1078 = vmatprep.subr.mxu0 0.0
    %1079 = vmatpush2.msra.mxu0 0.0
    %1080 = vmatprep.mubr.f32.mxu0 0.0
    %1081 = vmatmul.mubr.f32.gmra.mxu0 %v165
    %v1082 = vpop.f32.mrf.mxu0
    %v1083 = vadd.f32 0.0, %v1082
    %v1084 = vpop.f32.mrf.mxu0
    %v1085 = vadd.f32 0.0, %v1084
    %1086 = vmatprep.mubr.f32.mxu0 0.0
    %1087 = vmatmul.mubr.f32.gmra.mxu0 %v167
    %v1088 = vpop.f32.mrf.mxu0
    %v1089 = vadd.f32 0.0, %v1088
    %v1090 = vpop.f32.mrf.mxu0
    %v1091 = vadd.f32 0.0, %v1090
    %1092 = vdwg.mxu0
    %1093 = vmatprep.subr.mxu0 0.0
    %1094 = vmatpush1.msra.mxu0 0.0
    %1095 = vmatprep.subr.mxu0 0.0
    %1096 = vmatpush1.msra.mxu0 0.0
    %1097 = vmatprep.subr.mxu0 0.0
    %1098 = vmatpush1.msra.mxu0 0.0
    %1099 = vmatprep.subr.mxu0 0.0
    %1100 = vmatpush1.msra.mxu0 0.0
    %1101 = vmatprep.subr.mxu0 0.0
    %1102 = vmatpush1.msra.mxu0 0.0
    %1103 = vmatprep.subr.mxu0 0.0
    %1104 = vmatpush1.msra.mxu0 0.0
    %1105 = vmatprep.subr.mxu0 0.0
    %1106 = vmatpush1.msra.mxu0 0.0
    %1107 = vmatprep.subr.mxu0 0.0
    %1108 = vmatpush1.msra.mxu0 0.0
    %1109 = vmatprep.subr.mxu0 0.0
    %1110 = vmatpush1.msra.mxu0 0.0
    %1111 = vmatprep.subr.mxu0 0.0
    %1112 = vmatpush1.msra.mxu0 0.0
    %1113 = vmatprep.subr.mxu0 0.0
    %1114 = vmatpush1.msra.mxu0 0.0
    %1115 = vmatprep.subr.mxu0 0.0
    %1116 = vmatpush1.msra.mxu0 0.0
    %1117 = vmatprep.subr.mxu0 0.0
    %1118 = vmatpush1.msra.mxu0 0.0
    %1119 = vmatprep.subr.mxu0 0.0
    %1120 = vmatpush1.msra.mxu0 0.0
    %1121 = vmatprep.subr.mxu0 0.0
    %1122 = vmatpush1.msra.mxu0 %v157
    %1123 = vmatprep.subr.mxu0 0.0
    %1124 = vmatpush1.msra.mxu0 %v132
    %1125 = vmatprep.subr.mxu0 0.0
    %1126 = vmatpush2.msra.mxu0 0.0
    %1127 = vmatprep.subr.mxu0 0.0
    %1128 = vmatpush2.msra.mxu0 0.0
    %1129 = vmatprep.subr.mxu0 0.0
    %1130 = vmatpush2.msra.mxu0 0.0
    %1131 = vmatprep.subr.mxu0 0.0
    %1132 = vmatpush2.msra.mxu0 0.0
    %1133 = vmatprep.subr.mxu0 0.0
    %1134 = vmatpush2.msra.mxu0 0.0
    %1135 = vmatprep.subr.mxu0 0.0
    %1136 = vmatpush2.msra.mxu0 0.0
    %1137 = vmatprep.subr.mxu0 0.0
    %1138 = vmatpush2.msra.mxu0 0.0
    %1139 = vmatprep.subr.mxu0 0.0
    %1140 = vmatpush2.msra.mxu0 0.0
    %1141 = vmatprep.subr.mxu0 0.0
    %1142 = vmatpush2.msra.mxu0 0.0
    %1143 = vmatprep.subr.mxu0 0.0
    %1144 = vmatpush2.msra.mxu0 0.0
    %1145 = vmatprep.subr.mxu0 0.0
    %1146 = vmatpush2.msra.mxu0 0.0
    %1147 = vmatprep.subr.mxu0 0.0
    %1148 = vmatpush2.msra.mxu0 0.0
    %1149 = vmatprep.subr.mxu0 0.0
    %1150 = vmatpush2.msra.mxu0 0.0
    %1151 = vmatprep.subr.mxu0 0.0
    %1152 = vmatpush2.msra.mxu0 0.0
    %1153 = vmatprep.subr.mxu0 0.0
    %1154 = vmatpush2.msra.mxu0 0.0
    %1155 = vmatprep.subr.mxu0 0.0
    %1156 = vmatpush2.msra.mxu0 0.0
    %1157 = vmatprep.mubr.f32.mxu0 0.0
    %1158 = vmatmul.mubr.f32.gmra.mxu0 %v165
    %v1159 = vpop.f32.mrf.mxu0
    %v1160 = vadd.f32 0.0, %v1159
    %v1161 = vpop.f32.mrf.mxu0
    %1162 = vmatprep.mubr.f32.mxu0 0.0
    %1163 = vmatmul.mubr.f32.gmra.mxu0 %v167
    %v1164 = vpop.f32.mrf.mxu0
    %v1165 = vadd.f32 0.0, %v1164
    %v1166 = vpop.f32.mrf.mxu0
    %1167 = vdwg.mxu0
    %v1168 = vadd.f32 %v108, %v109
    %v1169 = vadd.f32 %v1168, %v110
    %v1170 = vadd.f32 %v1169, %v111
    %v1171 = vadd.f32 %v1170, %v112
    %v1172 = vadd.f32 %v1171, %v113
    %v1173 = vadd.f32 %v1172, %v114
    %v1174 = vadd.f32 %v1173, %v115
    %v1175 = vadd.f32 %v1174, %v116
    %v1176 = vadd.f32 %v1175, %v117
    %v1177 = vadd.f32 %v1176, %v118
    %v1178 = vadd.f32 %v1177, %v119
    %v1179 = vadd.f32 %v1178, %v120
    %v1180 = vadd.f32 %v1179, %v121
    %v1181 = vadd.f32 %v1180, %v122
    %v1182 = vadd.f32 %v1181, %v123
    %v1183 = vadd.f32 %v1182, %v124
    %v1184 = vadd.f32 %v1183, %v125
    %v1185 = vadd.f32 %v1184, %v126
    %v1186 = vadd.f32 %v1185, %v127
    %v1187 = vadd.f32 %v1186, %v128
    %v1188 = vadd.f32 %v1187, %v129
    %v1189 = vadd.f32 %v1188, %v130
    %v1190 = vadd.f32 %v1189, %v131
    %vm1191 = vcmask 523264
    %v1192 = vsel %vm1191, %v132, 0.0
    %v1193 = vadd.f32 %v1190, %v1192
    %1194 = vadd.xlane.f32.xlu0 %v1193
    %v1195 = vpop.xlane.xlu0 %1194
    %v1196 = vadd.f32 %v133, %v134
    %v1197 = vadd.f32 %v1196, %v135
    %v1198 = vadd.f32 %v1197, %v136
    %v1199 = vadd.f32 %v1198, %v137
    %v1200 = vadd.f32 %v1199, %v138
    %v1201 = vadd.f32 %v1200, %v139
    %v1202 = vadd.f32 %v1201, %v140
    %v1203 = vadd.f32 %v1202, %v141
    %v1204 = vadd.f32 %v1203, %v142
    %v1205 = vadd.f32 %v1204, %v143
    %v1206 = vadd.f32 %v1205, %v144
    %v1207 = vadd.f32 %v1206, %v145
    %v1208 = vadd.f32 %v1207, %v146
    %v1209 = vadd.f32 %v1208, %v147
    %v1210 = vadd.f32 %v1209, %v148
    %v1211 = vadd.f32 %v1210, %v149
    %v1212 = vadd.f32 %v1211, %v150
    %v1213 = vadd.f32 %v1212, %v151
    %v1214 = vadd.f32 %v1213, %v152
    %v1215 = vadd.f32 %v1214, %v153
    %v1216 = vadd.f32 %v1215, %v154
    %v1217 = vadd.f32 %v1216, %v155
    %v1218 = vadd.f32 %v1217, %v156
    %v1219 = vsel %vm1191, %v157, 0.0
    %v1220 = vadd.f32 %v1218, %v1219
    %1221 = vadd.xlane.f32.xlu0 %v1220
    %v1222 = vpop.xlane.xlu0 %1221
    %v1225 = vlaneseq
    %v1226 = vshrl.u32 %v1225, 7
    %v1227 = vsub.s32 %v81, %v1226
    %v1228 = vrot.slane %v1195, %v1227
    %v1229 = vlaneseq
    %v1230 = vshrl.u32 %v1229, 7
    %v1231 = vsub.s32 %v86, %v1230
    %v1232 = vrot.slane %v1222, %v1231
    %v1233 = vsel %vm91, %v1232, %v1228
    %v1234 = vsel %vm93, %v1233, %v1233
    %v1235 = vsel %vm95, %v1233, %v1234
    %v1236 = vsel %vm97, %v1233, %v1235
    %v1237 = vsel %vm99, %v1233, %v1236
    %v1238 = vsel %vm101, %v1233, %v1237
    %v1239 = vsel %vm103, %v1233, %v1238
    %v1241 = vmul.f32 %v106, %v1239
    %v1242 = vmul.f32 %v107, %v1239
    %1245 = vrot.lane.b32.xlu0 %v1241, 120
    %v1246 = vpop.permute.xlu0 %1245
    %1247 = vrot.lane.b32.xlu0 %v1242, 120
    %v1248 = vpop.permute.xlu0 %1247
    %v1251 = vsel %vm164, %v1246, 0.0
    %1252 = vadd.xlane.f32.xlu0 %v1251
    %v1253 = vpop.xlane.xlu0 %1252
    %v1254 = vsel %vm164, %v1248, 0.0
    %1255 = vadd.xlane.f32.xlu0 %v1254
    %v1256 = vpop.xlane.xlu0 %1255
    %v1257 = vmul.f32 %v1253, 0.00031887754
    %v1258 = vmul.f32 %v1256, 0.00031887754
    %v1259 = vsub.f32 %v236, %v1257
    %v1260 = vsub.f32 %v238, %v1257
    %v1261 = vsub.f32 %v313, %v1257
    %v1262 = vsub.f32 %v315, %v1257
    %v1263 = vsub.f32 %v390, %v1257
    %v1264 = vsub.f32 %v392, %v1257
    %v1265 = vsub.f32 %v467, %v1257
    %v1266 = vsub.f32 %v469, %v1257
    %v1267 = vsub.f32 %v544, %v1257
    %v1268 = vsub.f32 %v546, %v1257
    %v1269 = vsub.f32 %v621, %v1257
    %v1270 = vsub.f32 %v623, %v1257
    %v1271 = vsub.f32 %v698, %v1257
    %v1272 = vsub.f32 %v700, %v1257
    %v1273 = vsub.f32 %v775, %v1257
    %v1274 = vsub.f32 %v777, %v1257
    %v1275 = vsub.f32 %v852, %v1257
    %v1276 = vsub.f32 %v854, %v1257
    %v1277 = vsub.f32 %v929, %v1257
    %v1278 = vsub.f32 %v931, %v1257
    %v1279 = vsub.f32 %v1006, %v1257
    %v1280 = vsub.f32 %v1008, %v1257
    %v1281 = vsub.f32 %v1083, %v1257
    %v1282 = vsub.f32 %v1085, %v1257
    %v1283 = vsub.f32 %v1160, %v1257
    %v1284 = vsub.f32 %v242, %v1258
    %v1285 = vsub.f32 %v244, %v1258
    %v1286 = vsub.f32 %v319, %v1258
    %v1287 = vsub.f32 %v321, %v1258
    %v1288 = vsub.f32 %v396, %v1258
    %v1289 = vsub.f32 %v398, %v1258
    %v1290 = vsub.f32 %v473, %v1258
    %v1291 = vsub.f32 %v475, %v1258
    %v1292 = vsub.f32 %v550, %v1258
    %v1293 = vsub.f32 %v552, %v1258
    %v1294 = vsub.f32 %v627, %v1258
    %v1295 = vsub.f32 %v629, %v1258
    %v1296 = vsub.f32 %v704, %v1258
    %v1297 = vsub.f32 %v706, %v1258
    %v1298 = vsub.f32 %v781, %v1258
    %v1299 = vsub.f32 %v783, %v1258
    %v1300 = vsub.f32 %v858, %v1258
    %v1301 = vsub.f32 %v860, %v1258
    %v1302 = vsub.f32 %v935, %v1258
    %v1303 = vsub.f32 %v937, %v1258
    %v1304 = vsub.f32 %v1012, %v1258
    %v1305 = vsub.f32 %v1014, %v1258
    %v1306 = vsub.f32 %v1089, %v1258
    %v1307 = vsub.f32 %v1091, %v1258
    %v1308 = vsub.f32 %v1165, %v1258
    %v1309 = vmul.f32 %v1259, %v1259
    %v1310 = vmul.f32 %v1260, %v1260
    %v1311 = vmul.f32 %v1261, %v1261
    %v1312 = vmul.f32 %v1262, %v1262
    %v1313 = vmul.f32 %v1263, %v1263
    %v1314 = vmul.f32 %v1264, %v1264
    %v1315 = vmul.f32 %v1265, %v1265
    %v1316 = vmul.f32 %v1266, %v1266
    %v1317 = vmul.f32 %v1267, %v1267
    %v1318 = vmul.f32 %v1268, %v1268
    %v1319 = vmul.f32 %v1269, %v1269
    %v1320 = vmul.f32 %v1270, %v1270
    %v1321 = vmul.f32 %v1271, %v1271
    %v1322 = vmul.f32 %v1272, %v1272
    %v1323 = vmul.f32 %v1273, %v1273
    %v1324 = vmul.f32 %v1274, %v1274
    %v1325 = vmul.f32 %v1275, %v1275
    %v1326 = vmul.f32 %v1276, %v1276
    %v1327 = vmul.f32 %v1277, %v1277
    %v1328 = vmul.f32 %v1278, %v1278
    %v1329 = vmul.f32 %v1279, %v1279
    %v1330 = vmul.f32 %v1280, %v1280
    %v1331 = vmul.f32 %v1281, %v1281
    %v1332 = vmul.f32 %v1282, %v1282
    %v1333 = vmul.f32 %v1283, %v1283
    %v1334 = vmul.f32 %v1284, %v1284
    %v1335 = vmul.f32 %v1285, %v1285
    %v1336 = vmul.f32 %v1286, %v1286
    %v1337 = vmul.f32 %v1287, %v1287
    %v1338 = vmul.f32 %v1288, %v1288
    %v1339 = vmul.f32 %v1289, %v1289
    %v1340 = vmul.f32 %v1290, %v1290
    %v1341 = vmul.f32 %v1291, %v1291
    %v1342 = vmul.f32 %v1292, %v1292
    %v1343 = vmul.f32 %v1293, %v1293
    %v1344 = vmul.f32 %v1294, %v1294
    %v1345 = vmul.f32 %v1295, %v1295
    %v1346 = vmul.f32 %v1296, %v1296
    %v1347 = vmul.f32 %v1297, %v1297
    %v1348 = vmul.f32 %v1298, %v1298
    %v1349 = vmul.f32 %v1299, %v1299
    %v1350 = vmul.f32 %v1300, %v1300
    %v1351 = vmul.f32 %v1301, %v1301
    %v1352 = vmul.f32 %v1302, %v1302
    %v1353 = vmul.f32 %v1303, %v1303
    %v1354 = vmul.f32 %v1304, %v1304
    %v1355 = vmul.f32 %v1305, %v1305
    %v1356 = vmul.f32 %v1306, %v1306
    %v1357 = vmul.f32 %v1307, %v1307
    %v1358 = vmul.f32 %v1308, %v1308
    %v1359 = vadd.f32 %v1309, %v1310
    %v1360 = vadd.f32 %v1359, %v1311
    %v1361 = vadd.f32 %v1360, %v1312
    %v1362 = vadd.f32 %v1361, %v1313
    %v1363 = vadd.f32 %v1362, %v1314
    %v1364 = vadd.f32 %v1363, %v1315
    %v1365 = vadd.f32 %v1364, %v1316
    %v1366 = vadd.f32 %v1365, %v1317
    %v1367 = vadd.f32 %v1366, %v1318
    %v1368 = vadd.f32 %v1367, %v1319
    %v1369 = vadd.f32 %v1368, %v1320
    %v1370 = vadd.f32 %v1369, %v1321
    %v1371 = vadd.f32 %v1370, %v1322
    %v1372 = vadd.f32 %v1371, %v1323
    %v1373 = vadd.f32 %v1372, %v1324
    %v1374 = vadd.f32 %v1373, %v1325
    %v1375 = vadd.f32 %v1374, %v1326
    %v1376 = vadd.f32 %v1375, %v1327
    %v1377 = vadd.f32 %v1376, %v1328
    %v1378 = vadd.f32 %v1377, %v1329
    %v1379 = vadd.f32 %v1378, %v1330
    %v1380 = vadd.f32 %v1379, %v1331
    %v1381 = vadd.f32 %v1380, %v1332
    %v1382 = vsel %vm1191, %v1333, 0.0
    %v1383 = vadd.f32 %v1381, %v1382
    %1384 = vadd.xlane.f32.xlu0 %v1383
    %v1385 = vpop.xlane.xlu0 %1384
    %v1386 = vadd.f32 %v1334, %v1335
    %v1387 = vadd.f32 %v1386, %v1336
    %v1388 = vadd.f32 %v1387, %v1337
    %v1389 = vadd.f32 %v1388, %v1338
    %v1390 = vadd.f32 %v1389, %v1339
    %v1391 = vadd.f32 %v1390, %v1340
    %v1392 = vadd.f32 %v1391, %v1341
    %v1393 = vadd.f32 %v1392, %v1342
    %v1394 = vadd.f32 %v1393, %v1343
    %v1395 = vadd.f32 %v1394, %v1344
    %v1396 = vadd.f32 %v1395, %v1345
    %v1397 = vadd.f32 %v1396, %v1346
    %v1398 = vadd.f32 %v1397, %v1347
    %v1399 = vadd.f32 %v1398, %v1348
    %v1400 = vadd.f32 %v1399, %v1349
    %v1401 = vadd.f32 %v1400, %v1350
    %v1402 = vadd.f32 %v1401, %v1351
    %v1403 = vadd.f32 %v1402, %v1352
    %v1404 = vadd.f32 %v1403, %v1353
    %v1405 = vadd.f32 %v1404, %v1354
    %v1406 = vadd.f32 %v1405, %v1355
    %v1407 = vadd.f32 %v1406, %v1356
    %v1408 = vadd.f32 %v1407, %v1357
    %v1409 = vsel %vm1191, %v1358, 0.0
    %v1410 = vadd.f32 %v1408, %v1409
    %1411 = vadd.xlane.f32.xlu0 %v1410
    %v1412 = vpop.xlane.xlu0 %1411
    %v1413 = vmul.f32 %v1385, 0.00031887754
    %v1414 = vmul.f32 %v1412, 0.00031887754
    %v1415 = vadd.f32 %v1413, 0.001
    %v1416 = vadd.f32 %v1414, 0.001
    %v1417 = vrsqrt.pop %v1415
    %v1418 = vrsqrt.pop %v1416
    %v1419 = vmul.f32 %v1417, %v40
    %v1420 = vmul.f32 %v1418, %v41
    %1422 = vset.pattern.permute.xlu0 25
    %1423 = vperm.xlu0 %1422, %v1419
    %v1424 = vpop.permute.xlu0 %1423
    %1427 = vset.pattern.permute.xlu0 25
    %1428 = vperm.xlu0 %1427, %v1420
    %v1429 = vpop.permute.xlu0 %1428
    %v1431 = vmul.f32 %v1259, %v1424
    %v1432 = vmul.f32 %v1260, %v1424
    %v1433 = vmul.f32 %v1261, %v1424
    %v1434 = vmul.f32 %v1262, %v1424
    %v1435 = vmul.f32 %v1263, %v1424
    %v1436 = vmul.f32 %v1264, %v1424
    %v1437 = vmul.f32 %v1265, %v1424
    %v1438 = vmul.f32 %v1266, %v1424
    %v1439 = vmul.f32 %v1267, %v1424
    %v1440 = vmul.f32 %v1268, %v1424
    %v1441 = vmul.f32 %v1269, %v1424
    %v1442 = vmul.f32 %v1270, %v1424
    %v1443 = vmul.f32 %v1271, %v1424
    %v1444 = vmul.f32 %v1272, %v1424
    %v1445 = vmul.f32 %v1273, %v1424
    %v1446 = vmul.f32 %v1274, %v1424
    %v1447 = vmul.f32 %v1275, %v1424
    %v1448 = vmul.f32 %v1276, %v1424
    %v1449 = vmul.f32 %v1277, %v1424
    %v1450 = vmul.f32 %v1278, %v1424
    %v1451 = vmul.f32 %v1279, %v1424
    %v1452 = vmul.f32 %v1280, %v1424
    %v1453 = vmul.f32 %v1281, %v1424
    %v1454 = vmul.f32 %v1282, %v1424
    %v1455 = vmul.f32 %v1283, %v1424
    %v1456 = vmul.f32 %v1284, %v1429
    %v1457 = vmul.f32 %v1285, %v1429
    %v1458 = vmul.f32 %v1286, %v1429
    %v1459 = vmul.f32 %v1287, %v1429
    %v1460 = vmul.f32 %v1288, %v1429
    %v1461 = vmul.f32 %v1289, %v1429
    %v1462 = vmul.f32 %v1290, %v1429
    %v1463 = vmul.f32 %v1291, %v1429
    %v1464 = vmul.f32 %v1292, %v1429
    %v1465 = vmul.f32 %v1293, %v1429
    %v1466 = vmul.f32 %v1294, %v1429
    %v1467 = vmul.f32 %v1295, %v1429
    %v1468 = vmul.f32 %v1296, %v1429
    %v1469 = vmul.f32 %v1297, %v1429
    %v1470 = vmul.f32 %v1298, %v1429
    %v1471 = vmul.f32 %v1299, %v1429
    %v1472 = vmul.f32 %v1300, %v1429
    %v1473 = vmul.f32 %v1301, %v1429
    %v1474 = vmul.f32 %v1302, %v1429
    %v1475 = vmul.f32 %v1303, %v1429
    %v1476 = vmul.f32 %v1304, %v1429
    %v1477 = vmul.f32 %v1305, %v1429
    %v1478 = vmul.f32 %v1306, %v1429
    %v1479 = vmul.f32 %v1307, %v1429
    %v1480 = vmul.f32 %v1308, %v1429
    %1482 = vset.pattern.permute.xlu0 26
    %1483 = vperm.xlu0 %1482, %v40
    %v1484 = vpop.permute.xlu0 %1483
    %1487 = vset.pattern.permute.xlu0 26
    %1488 = vperm.xlu0 %1487, %v41
    %v1489 = vpop.permute.xlu0 %1488
    %v1491 = vadd.f32 %v1431, %v1484
    %v1492 = vadd.f32 %v1432, %v1484
    %v1493 = vadd.f32 %v1433, %v1484
    %v1494 = vadd.f32 %v1434, %v1484
    %v1495 = vadd.f32 %v1435, %v1484
    %v1496 = vadd.f32 %v1436, %v1484
    %v1497 = vadd.f32 %v1437, %v1484
    %v1498 = vadd.f32 %v1438, %v1484
    %v1499 = vadd.f32 %v1439, %v1484
    %v1500 = vadd.f32 %v1440, %v1484
    %v1501 = vadd.f32 %v1441, %v1484
    %v1502 = vadd.f32 %v1442, %v1484
    %v1503 = vadd.f32 %v1443, %v1484
    %v1504 = vadd.f32 %v1444, %v1484
    %v1505 = vadd.f32 %v1445, %v1484
    %v1506 = vadd.f32 %v1446, %v1484
    %v1507 = vadd.f32 %v1447, %v1484
    %v1508 = vadd.f32 %v1448, %v1484
    %v1509 = vadd.f32 %v1449, %v1484
    %v1510 = vadd.f32 %v1450, %v1484
    %v1511 = vadd.f32 %v1451, %v1484
    %v1512 = vadd.f32 %v1452, %v1484
    %v1513 = vadd.f32 %v1453, %v1484
    %v1514 = vadd.f32 %v1454, %v1484
    %v1515 = vadd.f32 %v1455, %v1484
    %v1516 = vadd.f32 %v1456, %v1489
    %v1517 = vadd.f32 %v1457, %v1489
    %v1518 = vadd.f32 %v1458, %v1489
    %v1519 = vadd.f32 %v1459, %v1489
    %v1520 = vadd.f32 %v1460, %v1489
    %v1521 = vadd.f32 %v1461, %v1489
    %v1522 = vadd.f32 %v1462, %v1489
    %v1523 = vadd.f32 %v1463, %v1489
    %v1524 = vadd.f32 %v1464, %v1489
    %v1525 = vadd.f32 %v1465, %v1489
    %v1526 = vadd.f32 %v1466, %v1489
    %v1527 = vadd.f32 %v1467, %v1489
    %v1528 = vadd.f32 %v1468, %v1489
    %v1529 = vadd.f32 %v1469, %v1489
    %v1530 = vadd.f32 %v1470, %v1489
    %v1531 = vadd.f32 %v1471, %v1489
    %v1532 = vadd.f32 %v1472, %v1489
    %v1533 = vadd.f32 %v1473, %v1489
    %v1534 = vadd.f32 %v1474, %v1489
    %v1535 = vadd.f32 %v1475, %v1489
    %v1536 = vadd.f32 %v1476, %v1489
    %v1537 = vadd.f32 %v1477, %v1489
    %v1538 = vadd.f32 %v1478, %v1489
    %v1539 = vadd.f32 %v1479, %v1489
    %v1540 = vadd.f32 %v1480, %v1489
    %1541 = vst [vmem:[#allocation7] sm:$0xff] %v1491
    %1542 = vst [vmem:[#allocation7 + $0x8] sm:$0xff] %v1492
    %1543 = vst [vmem:[#allocation7 + $0x10] sm:$0xff] %v1493
    %1544 = vst [vmem:[#allocation7 + $0x18] sm:$0xff] %v1494
    %1545 = vst [vmem:[#allocation7 + $0x20] sm:$0xff] %v1495
    %1546 = vst [vmem:[#allocation7 + $0x28] sm:$0xff] %v1496
    %1547 = vst [vmem:[#allocation7 + $0x30] sm:$0xff] %v1497
    %1548 = vst [vmem:[#allocation7 + $0x38] sm:$0xff] %v1498
    %1549 = vst [vmem:[#allocation7 + $0x40] sm:$0xff] %v1499
    %1550 = vst [vmem:[#allocation7 + $0x48] sm:$0xff] %v1500
    %1551 = vst [vmem:[#allocation7 + $0x50] sm:$0xff] %v1501
    %1552 = vst [vmem:[#allocation7 + $0x58] sm:$0xff] %v1502
    %1553 = vst [vmem:[#allocation7 + $0x60] sm:$0xff] %v1503
    %1554 = vst [vmem:[#allocation7 + $0x68] sm:$0xff] %v1504
    %1555 = vst [vmem:[#allocation7 + $0x70] sm:$0xff] %v1505
    %1556 = vst [vmem:[#allocation7 + $0x78] sm:$0xff] %v1506
    %1557 = vst [vmem:[#allocation7 + $0x80] sm:$0xff] %v1507
    %1558 = vst [vmem:[#allocation7 + $0x88] sm:$0xff] %v1508
    %1559 = vst [vmem:[#allocation7 + $0x90] sm:$0xff] %v1509
    %1560 = vst [vmem:[#allocation7 + $0x98] sm:$0xff] %v1510
    %1561 = vst [vmem:[#allocation7 + $0xa0] sm:$0xff] %v1511
    %1562 = vst [vmem:[#allocation7 + $0xa8] sm:$0xff] %v1512
    %1563 = vst [vmem:[#allocation7 + $0xb0] sm:$0xff] %v1513
    %1564 = vst [vmem:[#allocation7 + $0xb8] sm:$0xff] %v1514
    %1565 = vst.msk [vmem:[#allocation7 + $0xc0] sm:$0xff] %vm1191, %v1515
    %1566 = vst [vmem:[#allocation7 + $0xc8] sm:$0xff] %v1516
    %1567 = vst [vmem:[#allocation7 + $0xd0] sm:$0xff] %v1517
    %1568 = vst [vmem:[#allocation7 + $0xd8] sm:$0xff] %v1518
    %1569 = vst [vmem:[#allocation7 + $0xe0] sm:$0xff] %v1519
    %1570 = vst [vmem:[#allocation7 + $0xe8] sm:$0xff] %v1520
    %1571 = vst [vmem:[#allocation7 + $0xf0] sm:$0xff] %v1521
    %1572 = vst [vmem:[#allocation7 + $0xf8] sm:$0xff] %v1522
    %1573 = vst [vmem:[#allocation7 + $0x100] sm:$0xff] %v1523
    %1574 = vst [vmem:[#allocation7 + $0x108] sm:$0xff] %v1524
    %1575 = vst [vmem:[#allocation7 + $0x110] sm:$0xff] %v1525
    %1576 = vst [vmem:[#allocation7 + $0x118] sm:$0xff] %v1526
    %1577 = vst [vmem:[#allocation7 + $0x120] sm:$0xff] %v1527
    %1578 = vst [vmem:[#allocation7 + $0x128] sm:$0xff] %v1528
    %1579 = vst [vmem:[#allocation7 + $0x130] sm:$0xff] %v1529
    %1580 = vst [vmem:[#allocation7 + $0x138] sm:$0xff] %v1530
    %1581 = vst [vmem:[#allocation7 + $0x140] sm:$0xff] %v1531
    %1582 = vst [vmem:[#allocation7 + $0x148] sm:$0xff] %v1532
    %1583 = vst [vmem:[#allocation7 + $0x150] sm:$0xff] %v1533
    %1584 = vst [vmem:[#allocation7 + $0x158] sm:$0xff] %v1534
    %1585 = vst [vmem:[#allocation7 + $0x160] sm:$0xff] %v1535
    %1586 = vst [vmem:[#allocation7 + $0x168] sm:$0xff] %v1536
    %1587 = vst [vmem:[#allocation7 + $0x170] sm:$0xff] %v1537
    %1588 = vst [vmem:[#allocation7 + $0x178] sm:$0xff] %v1538
    %1589 = vst [vmem:[#allocation7 + $0x180] sm:$0xff] %v1539
    %1590 = vst.msk [vmem:[#allocation7 + $0x188] sm:$0xff] %vm1191, %v1540
    // Predicated region
    $region18: #{tpu_custom_call.1} parent=1 // pred_check
      _
    $region19: #{tpu_custom_call.1} parent=1 // pred_check_branch
      %1592 = sbr.rel (0) target = $region21
    $region20: #{tpu_custom_call.1} parent=1 // pred_region
      %s1594 = ssub.s32 6400, 6400
      %1595 = vsyncadd [#allocation4], %s1594
      %s1596 = sshll.u32 [#allocation7], 4
      %s1597 = int_to_ptr.vmem [resolvable:$true] %s1596
      %1602 = dma.vmem_to_hbm [thread:$0]  %s1597, 6400, %s2, [#allocation4], 3200, 3200, 200
    $region21: #{tpu_custom_call.1} parent=1 // pred_fallthru
      _
    // Predicated region
    $region22: #{tpu_custom_call.1} parent=1 // pred_check
      _
    $region23: #{tpu_custom_call.1} parent=1 // pred_check_branch
      %1604 = sbr.rel (0) target = $region25
    $region24: #{tpu_custom_call.1} parent=1 // pred_region
      %1605 = dma.done [#allocation4], 6400
    $region25: #{tpu_custom_call.1} parent=1 // pred_fallthru
      _
    %1606 = vsyncpa [#allocation3], 1
    %1607 = vsyncpa [#allocation6], 1
    %1608 = vsyncpa [#allocation4], 1

</llo_original>
